<compile_context>
chip_gen: v6e
topology: v6e:2x2x1
jax: 0.10.0
libtpu: 0.0.40
codegen_flags: <defaults>
</compile_context>

<pallas_src>
import functools

import jax
import jax.numpy as jnp
from jax.experimental import pallas as pl
from jax.experimental.pallas import tpu as pltpu

F32 = jnp.float32

P_LEN = 2 * (512 * 2 * 5 + 512 * 2 + 512 * 2 + 512 + 256 + 256 + 128 + 128 + 64 + 64 + 3)
SLICE_IDX = [0, 512 * 4, 512 * 4, 512 * 4, 512 * 4, 512 * 4, 512 * 4, 512 * 4,
             512 * 2 + 256 * 2, 256 * 2 + 128 * 2, 128 * 2 + 64 * 2, 64 * 2 + 3 * 2]
for _i in range(1, len(SLICE_IDX)):
    SLICE_IDX[_i] = SLICE_IDX[_i - 1] + SLICE_IDX[_i]


def _ru(x, m):
    return ((x + m - 1) // m) * m


def _vmem_limit_bytes():
    # v5e/v6e: 128 MiB VMEM, v7x: 64 MiB -> budget per generation, keep headroom.
    try:
        cap = pltpu.get_tpu_info().vmem_capacity_bytes
    except Exception:
        cap = 64 * 1024 * 1024
    return max(32 * 1024 * 1024, min(100 * 1024 * 1024, (cap * 3) // 4))


_VMEM_LIMIT = _vmem_limit_bytes()


# ---------------------------------------------------------------------------
# Tiled matmul (+ bias) kernel:  (M,K) @ (K,N) + bias[N], shape-adaptive tiles
# ---------------------------------------------------------------------------
def _tile(d, cap, align):
    if d >= cap:
        return cap, _ru(d, cap)
    t = _ru(d, align)
    return t, t


@functools.lru_cache(maxsize=None)
def _matmul_call(Mp, Kp, Np, tm, tn, tk):
    def kernel(a_ref, b_ref, bias_ref, o_ref, acc_ref):
        @pl.when(pl.program_id(2) == 0)
        def _():
            acc_ref[...] = jnp.zeros_like(acc_ref)

        acc_ref[...] += jnp.dot(a_ref[...], b_ref[...],
                                preferred_element_type=jnp.float32)

        @pl.when(pl.program_id(2) == pl.num_programs(2) - 1)
        def _():
            o_ref[...] = acc_ref[...] + bias_ref[...]

    call = pl.pallas_call(
        kernel,
        out_shape=jax.ShapeDtypeStruct((Mp, Np), F32),
        grid=(Mp // tm, Np // tn, Kp // tk),
        in_specs=[
            pl.BlockSpec((tm, tk), lambda i, j, k: (i, k)),
            pl.BlockSpec((tk, tn), lambda i, j, k: (k, j)),
            pl.BlockSpec((1, tn), lambda i, j, k: (0, j)),
        ],
        out_specs=pl.BlockSpec((tm, tn), lambda i, j, k: (i, j)),
        scratch_shapes=[pltpu.VMEM((tm, tn), F32)],
        compiler_params=pltpu.CompilerParams(
            dimension_semantics=("parallel", "parallel", "arbitrary"),
            vmem_limit_bytes=_VMEM_LIMIT),
    )
    return jax.jit(call)


def matmul_bias(a, b, bias=None):
    M, K = a.shape
    _, N = b.shape
    tm, Mp = _tile(M, 256, 8)
    tk, Kp = _tile(K, 512, 8)
    tn, Np = _tile(N, 512, 8)
    if bias is None:
        bias = jnp.zeros((N,), F32)
    ap = a.astype(F32)
    bp = b.astype(F32)
    if (Mp, Kp) != (M, K):
        ap = jnp.pad(ap, ((0, Mp - M), (0, Kp - K)))
    if (Kp, Np) != (K, N):
        bp = jnp.pad(bp, ((0, Kp - K), (0, Np - N)))
    biasp = jnp.pad(bias.astype(F32), (0, Np - N)).reshape(1, Np)
    out = _matmul_call(Mp, Kp, Np, tm, tn, tk)(ap, bp, biasp)
    if (Mp, Np) != (M, N):
        out = out[:M, :N]
    return out


def conv1x1(x, w, b):
    B, H, W, Cin = x.shape
    Cout = w.shape[-1]
    y = matmul_bias(x.reshape(B * H * W, Cin), w.reshape(Cin, Cout), b)
    return y.reshape(B, H, W, Cout)


# ---------------------------------------------------------------------------
# Direct KxK "same" convolution kernel (stride 1, pad (K-1)//2), NHWC.
#   - double-buffered halo-window DMA (prefetch tile ti+1 while computing ti)
#   - weights DMA'd once per batch into a single-buffered VMEM scratch
#   - fused: relu on input, bias, vertical 2x pooling, residual add, sigmoid*255
# ---------------------------------------------------------------------------
@functools.lru_cache(maxsize=None)
def _conv_call(B, H, W, Cin, Cout, K, TH, relu_in, hpool, with_res, act):
    Wp = W + K - 1
    NT = H // TH
    OH = TH // 2 if hpool else TH
    Hout = H // 2 if hpool else H

    def kernel(*refs):
        x_hbm, w_hbm, b_ref = refs[0], refs[1], refs[2]
        i = 3
        res_ref = None
        if with_res:
            res_ref = refs[i]
            i += 1
        o_ref = refs[i]
        xwin, wbuf, acc, sem, wsem = refs[i + 1:i + 6]

        bi = pl.program_id(0)
        ti = pl.program_id(1)
        slot = ti % 2

        @pl.when(ti == 0)
        def _():
            # single resident weight copy + prime the first input window
            wcp = pltpu.make_async_copy(w_hbm, wbuf, wsem.at[0])
            wcp.start()
            pltpu.make_async_copy(x_hbm.at[bi, pl.ds(0, TH + K - 1)],
                                  xwin.at[0], sem.at[0]).start()
            wcp.wait()

        # wait for this tile's halo window
        pltpu.make_async_copy(x_hbm.at[bi, pl.ds(ti * TH, TH + K - 1)],
                              xwin.at[slot], sem.at[slot]).wait()

        # prefetch the next tile's window into the other slot
        @pl.when(ti + 1 < NT)
        def _():
            nslot = 1 - slot
            pltpu.make_async_copy(
                x_hbm.at[bi, pl.ds((ti + 1) * TH, TH + K - 1)],
                xwin.at[nslot], sem.at[nslot]).start()

        acc[...] = jnp.zeros_like(acc)

        def row_taps(ky):
            slab = xwin[slot, pl.ds(ky, TH)]            # (TH, Wp, Cin)
            if relu_in:
                slab = jnp.maximum(slab, 0.0)
            for kx in range(K):
                patch = slab[:, kx:kx + W, :].reshape(TH * W, Cin)
                acc[...] += jnp.dot(patch, wbuf[ky * K + kx],
                                    preferred_element_type=jnp.float32)

        if K <= 3:
            for ky in range(K):
                row_taps(ky)
        else:
            @pl.loop(0, K)
            def _(ky):
                row_taps(ky)

        out = acc[...] + b_ref[...]
        if hpool:
            r = out.reshape(TH // 2, 2, W, Cout)
            out = (0.5 * (r[:, 0] + r[:, 1])).reshape(1, TH // 2, W, Cout)
        else:
            out = out.reshape(1, TH, W, Cout)
        if with_res:
            out = out + res_ref[...]
        if act == "sigmoid255":
            out = 255.0 * jax.nn.sigmoid(out)
        o_ref[...] = out

    in_specs = [
        pl.BlockSpec(memory_space=pl.ANY),   # padded input, stays in HBM
        pl.BlockSpec(memory_space=pl.ANY),   # weights, copied once to VMEM
        pl.BlockSpec((1, Cout), lambda bi, ti: (0, 0)),
    ]
    if with_res:
        in_specs.append(
            pl.BlockSpec((1, TH, W, Cout), lambda bi, ti: (bi, ti, 0, 0)))

    call = pl.pallas_call(
        kernel,
        out_shape=jax.ShapeDtypeStruct((B, Hout, W, Cout), F32),
        grid=(B, NT),
        in_specs=in_specs,
        out_specs=pl.BlockSpec((1, OH, W, Cout), lambda bi, ti: (bi, ti, 0, 0)),
        scratch_shapes=[
            pltpu.VMEM((2, TH + K - 1, Wp, Cin), F32),
            pltpu.VMEM((K * K, Cin, Cout), F32),
            pltpu.VMEM((TH * W, Cout), F32),
            pltpu.SemaphoreType.DMA((2,)),
            pltpu.SemaphoreType.DMA((1,)),
        ],
        compiler_params=pltpu.CompilerParams(
            dimension_semantics=("parallel", "arbitrary"),
            vmem_limit_bytes=_VMEM_LIMIT),
    )
    return jax.jit(call)


def _pick_th(H, W, even):
    th = min(H, max(1, 4096 // W))
    while th > 1 and (H % th or (even and th % 2)):
        th -= 1
    if even and th % 2:
        th = 2
    return max(th, 1)


def conv2d_same(x, w, b, relu_in=False, hpool=False, residual=None, act=None):
    # x: (B,H,W,Cin); w: (K,K,Cin,Cout) [HWIO]; b: (Cout,)
    B, H, W, Cin = x.shape
    K = w.shape[0]
    Cout = w.shape[-1]
    if K == 1:
        assert not (relu_in or hpool or residual is not None or act)
        return conv1x1(x, w, b)
    P = (K - 1) // 2
    xp = jnp.pad(x.astype(F32), ((0, 0), (P, P), (P, P), (0, 0)))
    TH = _pick_th(H, W, hpool)
    wt = w.reshape(K * K, Cin, Cout).astype(F32)
    b2 = b.reshape(1, Cout).astype(F32)
    args = [xp, wt, b2]
    if residual is not None:
        args.append(residual.astype(F32))
    call = _conv_call(B, H, W, Cin, Cout, K, TH, bool(relu_in), bool(hpool),
                      residual is not None, act)
    return call(*args)


# ---------------------------------------------------------------------------
# InstanceNorm2d (affine, eps=1e-5, biased variance) and adaIN (+fused relu)
# ---------------------------------------------------------------------------
@functools.lru_cache(maxsize=None)
def _instnorm_call(B, H, W, C):
    eps = 1e-5

    def kernel(x_ref, g_ref, b_ref, o_ref):
        v = x_ref[0]
        m = jnp.mean(v, axis=(0, 1), keepdims=True)
        var = jnp.mean((v - m) * (v - m), axis=(0, 1), keepdims=True)
        g = g_ref[...].reshape(1, 1, C)
        bb = b_ref[...].reshape(1, 1, C)
        o_ref[0] = (v - m) / jnp.sqrt(var + eps) * g + bb

    call = pl.pallas_call(
        kernel,
        out_shape=jax.ShapeDtypeStruct((B, H, W, C), F32),
        grid=(B,),
        in_specs=[
            pl.BlockSpec((1, H, W, C), lambda b: (b, 0, 0, 0)),
            pl.BlockSpec((1, C), lambda b: (0, 0)),
            pl.BlockSpec((1, C), lambda b: (0, 0)),
        ],
        out_specs=pl.BlockSpec((1, H, W, C), lambda b: (b, 0, 0, 0)),
        compiler_params=pltpu.CompilerParams(
            dimension_semantics=("parallel",),
            vmem_limit_bytes=_VMEM_LIMIT),
    )
    return jax.jit(call)


def instance_norm(x, gamma, beta):
    B, H, W, C = x.shape
    return _instnorm_call(B, H, W, C)(x, gamma.reshape(1, C), beta.reshape(1, C))


@functools.lru_cache(maxsize=None)
def _adain_call(B, H, W, C, relu_out):
    eps = 1e-5
    n = H * W

    def kernel(x_ref, ms_ref, ss_ref, o_ref):
        v = x_ref[0]
        m = jnp.mean(v, axis=(0, 1), keepdims=True)
        c = v - m
        var_unb = jnp.sum(c * c, axis=(0, 1), keepdims=True) / float(n - 1)
        stdf = jnp.sqrt(var_unb) + eps          # torch.std (unbiased) + eps
        ms = ms_ref[...].reshape(1, 1, C)
        ss = ss_ref[...].reshape(1, 1, C)
        out = ss * c / stdf + ms
        if relu_out:
            out = jnp.maximum(out, 0.0)
        o_ref[0] = out

    call = pl.pallas_call(
        kernel,
        out_shape=jax.ShapeDtypeStruct((B, H, W, C), F32),
        grid=(B,),
        in_specs=[
            pl.BlockSpec((1, H, W, C), lambda b: (b, 0, 0, 0)),
            pl.BlockSpec((1, 1, C), lambda b: (b, 0, 0)),
            pl.BlockSpec((1, 1, C), lambda b: (b, 0, 0)),
        ],
        out_specs=pl.BlockSpec((1, H, W, C), lambda b: (b, 0, 0, 0)),
        compiler_params=pltpu.CompilerParams(
            dimension_semantics=("parallel",),
            vmem_limit_bytes=_VMEM_LIMIT),
    )
    return jax.jit(call)


def adain(x, mean_style, std_style, relu_out=False):
    B, H, W, C = x.shape
    return _adain_call(B, H, W, C, bool(relu_out))(
        x, mean_style.reshape(B, 1, C), std_style.reshape(B, 1, C))


# ---------------------------------------------------------------------------
# Separable spatial resampling on native NHWC (no HBM transposes):
#   h_transform: per-batch matmul over the H axis
#   w_transform: Pallas kernel applying a (Wout,W) matrix per row, optional
#                fused residual add.
# Used for both bilinear 2x upsampling and 2x2 average pooling.
# ---------------------------------------------------------------------------
@functools.lru_cache(maxsize=None)
def _wtrans_call(B, H, W, C, Wout, TN, with_res):
    def kernel(*refs):
        a_ref, x_ref = refs[0], refs[1]
        i = 2
        r_ref = None
        if with_res:
            r_ref = refs[i]
            i += 1
        o_ref = refs[i]
        A = a_ref[...]
        for r in range(TN):
            v = jnp.dot(A, x_ref[0, r], preferred_element_type=jnp.float32)
            if with_res:
                v = v + r_ref[0, r]
            o_ref[0, r] = v

    in_specs = [
        pl.BlockSpec((Wout, W), lambda b, t: (0, 0)),
        pl.BlockSpec((1, TN, W, C), lambda b, t: (b, t, 0, 0)),
    ]
    if with_res:
        in_specs.append(
            pl.BlockSpec((1, TN, Wout, C), lambda b, t: (b, t, 0, 0)))

    call = pl.pallas_call(
        kernel,
        out_shape=jax.ShapeDtypeStruct((B, H, Wout, C), F32),
        grid=(B, H // TN),
        in_specs=in_specs,
        out_specs=pl.BlockSpec((1, TN, Wout, C), lambda b, t: (b, t, 0, 0)),
        compiler_params=pltpu.CompilerParams(
            dimension_semantics=("parallel", "parallel"),
            vmem_limit_bytes=_VMEM_LIMIT),
    )
    return jax.jit(call)


def w_transform(x, A, residual=None):
    B, H, W, C = x.shape
    Wout = A.shape[0]
    TN = 8
    while TN > 1 and H % TN:
        TN //= 2
    args = [A.astype(F32), x.astype(F32)]
    if residual is not None:
        args.append(residual.astype(F32))
    return _wtrans_call(B, H, W, C, Wout, TN, residual is not None)(*args)


def h_transform(x, A):
    B, H, W, C = x.shape
    Hout = A.shape[0]
    outs = [matmul_bias(A, x[b].reshape(H, W * C)).reshape(1, Hout, W, C)
            for b in range(B)]
    return outs[0] if B == 1 else jnp.concatenate(outs, axis=0)


def _pool_matrix(n):
    m = jnp.zeros((n // 2, n), F32)
    r = jnp.arange(n // 2)
    m = m.at[r, 2 * r].set(0.5)
    m = m.at[r, 2 * r + 1].set(0.5)
    return m


def _bilinear_matrix(out_size, in_size):
    i = jnp.arange(out_size, dtype=F32)
    src = (i + 0.5) * (in_size / out_size) - 0.5
    src = jnp.clip(src, 0.0, float(in_size - 1))
    lo = jnp.floor(src).astype(jnp.int32)
    hi = jnp.minimum(lo + 1, in_size - 1)
    w_hi = src - lo.astype(F32)
    w_lo = 1.0 - w_hi
    A = jnp.zeros((out_size, in_size), F32)
    r = jnp.arange(out_size)
    A = A.at[r, lo].add(w_lo)
    A = A.at[r, hi].add(w_hi)
    return A


def avg_pool_2x2(x):
    B, H, W, C = x.shape
    y = h_transform(x, _pool_matrix(H))
    return w_transform(y, _pool_matrix(W))


def upsample_bilinear(x, out_h, out_w):
    B, H, W, C = x.shape
    y = h_transform(x, _bilinear_matrix(out_h, H))
    return w_transform(y, _bilinear_matrix(out_w, W))


# ---------------------------------------------------------------------------
# Fused self-attention (flash style):  s[j,i] = g_j.f_i, softmax over i,
# out[j,:] = sum_i A[i,j] h[i,:]; epilogue = gamma*out + x. The NxN score
# matrix never touches HBM.
# ---------------------------------------------------------------------------
@functools.lru_cache(maxsize=None)
def _attention_call(B, N, C, Cp, tq, tk):
    def kernel(gamma_ref, g_ref, f_ref, h_ref, x_ref, o_ref, m_sc, l_sc, acc_sc):
        ki = pl.program_id(2)

        @pl.when(ki == 0)
        def _():
            m_sc[...] = jnp.full_like(m_sc, -jnp.inf)
            l_sc[...] = jnp.zeros_like(l_sc)
            acc_sc[...] = jnp.zeros_like(acc_sc)

        # torch: scores[i,j]=f_i.g_j, softmax over dim=-2 (i); computing
        # s2[j,i]=g_j.f_i and softmaxing the last axis gives A^T directly.
        s = jnp.dot(g_ref[0], f_ref[0].T, preferred_element_type=jnp.float32)
        m_prev = m_sc[...]
        m_new = jnp.maximum(m_prev, jnp.max(s, axis=-1, keepdims=True))
        alpha = jnp.exp(m_prev - m_new)
        p = jnp.exp(s - m_new)
        l_sc[...] = alpha * l_sc[...] + jnp.sum(p, axis=-1, keepdims=True)
        acc_sc[...] = alpha * acc_sc[...] + jnp.dot(
            p, h_ref[0], preferred_element_type=jnp.float32)
        m_sc[...] = m_new

        @pl.when(ki == pl.num_programs(2) - 1)
        def _():
            att = acc_sc[...] / l_sc[...]
            o_ref[0] = gamma_ref[0] * att + x_ref[0]

    call = pl.pallas_call(
        kernel,
        out_shape=jax.ShapeDtypeStruct((B, N, C), F32),
        grid=(B, N // tq, N // tk),
        in_specs=[
            pl.BlockSpec(memory_space=pltpu.MemorySpace.SMEM),   # gamma scalar
            pl.BlockSpec((1, tq, Cp), lambda b, qi, ki: (b, qi, 0)),
            pl.BlockSpec((1, tk, Cp), lambda b, qi, ki: (b, ki, 0)),
            pl.BlockSpec((1, tk, C), lambda b, qi, ki: (b, ki, 0)),
            pl.BlockSpec((1, tq, C), lambda b, qi, ki: (b, qi, 0)),
        ],
        out_specs=pl.BlockSpec((1, tq, C), lambda b, qi, ki: (b, qi, 0)),
        scratch_shapes=[pltpu.VMEM((tq, 1), F32),
                        pltpu.VMEM((tq, 1), F32),
                        pltpu.VMEM((tq, C), F32)],
        compiler_params=pltpu.CompilerParams(
            dimension_semantics=("parallel", "parallel", "arbitrary"),
            vmem_limit_bytes=_VMEM_LIMIT),
    )
    return jax.jit(call)


def self_attention(x, p):
    B, H, W, C = x.shape
    Cp = C // 8
    N = H * W
    f = conv1x1(x, p["f_w"], p["f_b"]).reshape(B, N, Cp)
    g = conv1x1(x, p["g_w"], p["g_b"]).reshape(B, N, Cp)
    h = conv1x1(x, p["h_w"], p["h_b"]).reshape(B, N, C)
    xr = x.reshape(B, N, C)
    t = 256
    while N % t:
        t //= 2
    gamma = p["gamma"].reshape(1).astype(F32)
    out = _attention_call(B, N, C, Cp, t, t)(gamma, g, f, h, xr)
    return out.reshape(B, H, W, C)


# ---------------------------------------------------------------------------
# Network blocks
# ---------------------------------------------------------------------------
def res_block_down(x, p):
    B, H, W, C = x.shape
    # left branch: avg-pool commutes exactly with the 1x1 conv -> pool first
    out_res = conv1x1(avg_pool_2x2(x), p["l1_w"], p["l1_b"])
    # right branch: relu fused into conv input, vertical pooling fused into the
    # conv epilogue, horizontal pooling + residual add fused into w_transform.
    out = conv2d_same(x, p["r1_w"], p["r1_b"], relu_in=True)
    out = conv2d_same(out, p["r2_w"], p["r2_b"], relu_in=True, hpool=True)
    return w_transform(out, _pool_matrix(W), residual=out_res)


def res_block(x, p, psi):
    C4 = psi.shape[1]
    C = C4 // 4
    m1, s1 = psi[:, 0:C], psi[:, C:2 * C]
    m2, s2 = psi[:, 2 * C:3 * C], psi[:, 3 * C:4 * C]
    out = adain(x, m1, s1, relu_out=True)
    out = conv2d_same(out, p["c1_w"], p["c1_b"])
    out = adain(out, m2, s2, relu_out=True)
    return conv2d_same(out, p["c2_w"], p["c2_b"], residual=x)


def res_block_up(x, p, psi, in_ch, out_ch, out_hw, act=None):
    m1, s1 = psi[:, 0:in_ch], psi[:, in_ch:2 * in_ch]
    m2 = psi[:, 2 * in_ch:2 * in_ch + out_ch]
    s2 = psi[:, 2 * in_ch + out_ch:2 * (in_ch + out_ch)]
    out_res = conv1x1(upsample_bilinear(x, out_hw[0], out_hw[1]),
                      p["l1_w"], p["l1_b"])
    out = adain(x, m1, s1, relu_out=True)
    out = upsample_bilinear(out, out_hw[0], out_hw[1])
    out = conv2d_same(out, p["r1_w"], p["r1_b"])
    out = adain(out, m2, s2, relu_out=True)
    return conv2d_same(out, p["r2_w"], p["r2_b"], residual=out_res, act=act)


# ---------------------------------------------------------------------------
# Parameters (deterministic synthetic init; spectral_norm folded in)
# ---------------------------------------------------------------------------
def init_params(key):
    keys = iter(jax.random.split(key, 64))

    def cw(K, cin, cout):
        return 0.02 * jax.random.normal(next(keys), (K, K, cin, cout), F32)

    def cb(cout):
        return jnp.zeros((cout,), F32)

    def rbd(cin, cout, K=3):
        return {"l1_w": cw(1, cin, cout), "l1_b": cb(cout),
                "r1_w": cw(K, cin, cout), "r1_b": cb(cout),
                "r2_w": cw(K, cout, cout), "r2_b": cb(cout)}

    def rb(c):
        return {"c1_w": cw(3, c, c), "c1_b": cb(c),
                "c2_w": cw(3, c, c), "c2_b": cb(c)}

    def rbu(cin, cout, K=3):
        return {"l1_w": cw(1, cin, cout), "l1_b": cb(cout),
                "r1_w": cw(K, cin, cout), "r1_b": cb(cout),
                "r2_w": cw(K, cout, cout), "r2_b": cb(cout)}

    def sa(c):
        return {"f_w": cw(1, c, c // 8), "f_b": cb(c // 8),
                "g_w": cw(1, c, c // 8), "g_b": cb(c // 8),
                "h_w": cw(1, c, c), "h_b": cb(c),
                "gamma": jnp.zeros((1,), F32)}

    def inorm(c):
        return {"g": jnp.ones((1, c), F32), "b": jnp.zeros((1, c), F32)}

    return {
        "resDown1": rbd(3, 64, K=9), "in1": inorm(64),
        "resDown2": rbd(64, 128), "in2": inorm(128),
        "resDown3": rbd(128, 256), "in3": inorm(256),
        "att_down": sa(256),
        "resDown4": rbd(256, 512), "in4": inorm(512),
        "resDown5": rbd(512, 512), "in5": inorm(512),
        "resDown6": rbd(512, 512), "in6": inorm(512),
        "res1": rb(512), "res2": rb(512), "res3": rb(512),
        "res4": rb(512), "res5": rb(512),
        "resUp1": rbu(512, 512), "resUp2": rbu(512, 512),
        "resUp3": rbu(512, 256), "resUp4": rbu(256, 128),
        "att_up": sa(128),
        "resUp5": rbu(128, 64), "resUp6": rbu(64, 3, K=9),
        "p": 0.02 * jax.random.normal(next(keys), (P_LEN, 512), F32),
    }


# ---------------------------------------------------------------------------
# Generator forward (finetuning=False path)
# ---------------------------------------------------------------------------
def generator_forward(params, y, e, in_height):
    # y: (B, 3, H, W) NCHW; e: (B, 512, 1)
    # TODO(synk): math.isnan(p[0,0])/sys.exit host guard and the finetuning
    #             branch (psi) are host-side control-flow config, not implemented.
    e_mat = jnp.transpose(e[:, :, 0])                          # (512, B)
    e_psi = jnp.transpose(matmul_bias(params["p"], e_mat))     # (B, P_LEN)

    x = jnp.transpose(y, (0, 2, 3, 1)).astype(F32)             # NHWC
    pad = (256 - in_height) // 2 if in_height < 256 else 0     # Padding module
    x = jnp.pad(x, ((0, 0), (pad, pad), (pad, pad), (0, 0)))

    out = res_block_down(x, params["resDown1"])
    out = instance_norm(out, params["in1"]["g"], params["in1"]["b"])
    out = res_block_down(out, params["resDown2"])
    out = instance_norm(out, params["in2"]["g"], params["in2"]["b"])
    out = res_block_down(out, params["resDown3"])
    out = instance_norm(out, params["in3"]["g"], params["in3"]["b"])
    out = self_attention(out, params["att_down"])
    out = res_block_down(out, params["resDown4"])
    out = instance_norm(out, params["in4"]["g"], params["in4"]["b"])
    out = res_block_down(out, params["resDown5"])
    out = instance_norm(out, params["in5"]["g"], params["in5"]["b"])
    out = res_block_down(out, params["resDown6"])
    out = instance_norm(out, params["in6"]["g"], params["in6"]["b"])

    si = SLICE_IDX
    out = res_block(out, params["res1"], e_psi[:, si[0]:si[1]])
    out = res_block(out, params["res2"], e_psi[:, si[1]:si[2]])
    out = res_block(out, params["res3"], e_psi[:, si[2]:si[3]])
    out = res_block(out, params["res4"], e_psi[:, si[3]:si[4]])
    out = res_block(out, params["res5"], e_psi[:, si[4]:si[5]])

    h = out.shape[1]
    out = res_block_up(out, params["resUp1"], e_psi[:, si[5]:si[6]], 512, 512, (2 * h, 2 * h)); h *= 2
    out = res_block_up(out, params["resUp2"], e_psi[:, si[6]:si[7]], 512, 512, (2 * h, 2 * h)); h *= 2
    out = res_block_up(out, params["resUp3"], e_psi[:, si[7]:si[8]], 512, 256, (2 * h, 2 * h)); h *= 2
    out = res_block_up(out, params["resUp4"], e_psi[:, si[8]:si[9]], 256, 128, (2 * h, 2 * h)); h *= 2
    out = self_attention(out, params["att_up"])
    out = res_block_up(out, params["resUp5"], e_psi[:, si[9]:si[10]], 128, 64, (2 * h, 2 * h)); h *= 2
    out = res_block_up(out, params["resUp6"], e_psi[:, si[10]:si[11]], 64, 3,
                       (in_height, in_height), act="sigmoid255")   # sigmoid*255 fused

    return jnp.transpose(out, (0, 3, 1, 2))                    # back to NCHW


if __name__ == "__main__":
    # Padding(in_height) pads any smaller input up to 256, so 256 is the
    # smallest spatial size faithful to the module; batch kept at 1.
    in_height = 256
    B = 1
    key = jax.random.PRNGKey(0)
    kp, ky, ke = jax.random.split(key, 3)
    params = init_params(kp)
    y = jax.random.uniform(ky, (B, 3, in_height, in_height), F32)
    e = jax.random.normal(ke, (B, 512, 1), F32)

    out = generator_forward(params, y, e, in_height)
    out = jax.block_until_ready(out)
    assert out.shape == (B, 3, in_height, in_height)
    print("KERNEL_OK")
</pallas_src>

<mosaic_0001>
module attributes {stable_mosaic.version = 11 : i64} {
  func.func @kernel(%arg0: i32, %arg1: i32, %arg2: i32, %arg3: memref<256x512xf32, #tpu.memory_space<vmem>>, %arg4: memref<512x8xf32, #tpu.memory_space<vmem>>, %arg5: memref<1x8xf32, #tpu.memory_space<vmem>>, %arg6: memref<256x8xf32, #tpu.memory_space<vmem>>, %arg7: memref<256x8xf32, #tpu.memory_space<vmem>>) attributes {dimension_semantics = [#tpu.dimension_semantics<parallel>, #tpu.dimension_semantics<parallel>, #tpu.dimension_semantics<arbitrary>], iteration_bounds = array<i64: 68, 1, 1>, scalar_prefetch = 0 : i64, scratch_operands = 1 : i64, tpu.core_type = #tpu.core_type<tc>, window_params = [{transform_indices = @transform_0, window_bounds = array<i64: 256, 512>}, {transform_indices = @transform_1, window_bounds = array<i64: 512, 8>}, {transform_indices = @transform_2, window_bounds = array<i64: 1, 8>}, {transform_indices = @transform_3, window_bounds = array<i64: 256, 8>}]} {
    %c0_i32 = arith.constant 0 : i32
    %0 = arith.cmpi eq, %arg2, %c0_i32 : i32
    %1 = arith.extui %0 : i1 to i32
    %c0_i32_0 = arith.constant 0 : i32
    %2 = arith.cmpi ne, %1, %c0_i32_0 : i32
    scf.if %2 {
      %cst_10 = arith.constant 0.000000e+00 : f32
      %12 = vector.broadcast %cst_10 : f32 to vector<256x8xf32>
      %c0_11 = arith.constant 0 : index
      %c0_12 = arith.constant 0 : index
      %13 = vector.load %arg7[%c0_11, %c0_12] : memref<256x8xf32, #tpu.memory_space<vmem>>, vector<256x8xf32>
      tpu.vector_store %arg7[%c0_11, %c0_12], %12 {strides = array<i32>} : memref<256x8xf32, #tpu.memory_space<vmem>>, vector<256x8xf32>,
    } else {
    }
    %c0 = arith.constant 0 : index
    %c0_1 = arith.constant 0 : index
    %3 = vector.load %arg7[%c0, %c0_1] : memref<256x8xf32, #tpu.memory_space<vmem>>, vector<256x8xf32>
    %c0_2 = arith.constant 0 : index
    %c0_3 = arith.constant 0 : index
    %4 = vector.load %arg3[%c0_2, %c0_3] : memref<256x512xf32, #tpu.memory_space<vmem>>, vector<256x512xf32>
    %c0_4 = arith.constant 0 : index
    %c0_5 = arith.constant 0 : index
    %5 = vector.load %arg4[%c0_4, %c0_5] : memref<512x8xf32, #tpu.memory_space<vmem>>, vector<512x8xf32>
    %cst = arith.constant dense<0.000000e+00> : vector<256x8xf32>
    %6 = tpu.matmul %4, %5, %cst {dimension_numbers = #tpu.dot_dimension_numbers<[1], [0], [0], [1], [0, 0, 1, 1], [], []>} : vector<256x512xf32>, vector<512x8xf32>, vector<256x8xf32> -> vector<256x8xf32>
    %7 = arith.addf %3, %6 : vector<256x8xf32>
    %c0_6 = arith.constant 0 : index
    %c0_7 = arith.constant 0 : index
    %8 = vector.load %arg7[%c0_6, %c0_7] : memref<256x8xf32, #tpu.memory_space<vmem>>, vector<256x8xf32>
    tpu.vector_store %arg7[%c0_6, %c0_7], %7 {strides = array<i32>} : memref<256x8xf32, #tpu.memory_space<vmem>>, vector<256x8xf32>,
    %c0_i32_8 = arith.constant 0 : i32
    %9 = arith.cmpi eq, %arg2, %c0_i32_8 : i32
    %10 = arith.extui %9 : i1 to i32
    %c0_i32_9 = arith.constant 0 : i32
    %11 = arith.cmpi ne, %10, %c0_i32_9 : i32
    scf.if %11 {
      %c0_10 = arith.constant 0 : index
      %c0_11 = arith.constant 0 : index
      %12 = vector.load %arg7[%c0_10, %c0_11] : memref<256x8xf32, #tpu.memory_space<vmem>>, vector<256x8xf32>
      %c0_12 = arith.constant 0 : index
      %c0_13 = arith.constant 0 : index
      %13 = vector.load %arg5[%c0_12, %c0_13] : memref<1x8xf32, #tpu.memory_space<vmem>>, vector<1x8xf32>
      %14 = vector.broadcast %13 : vector<1x8xf32> to vector<256x8xf32>
      %15 = arith.addf %12, %14 : vector<256x8xf32>
      %c0_14 = arith.constant 0 : index
      %c0_15 = arith.constant 0 : index
      %16 = vector.load %arg6[%c0_14, %c0_15] : memref<256x8xf32, #tpu.memory_space<vmem>>, vector<256x8xf32>
      tpu.vector_store %arg6[%c0_14, %c0_15], %15 {strides = array<i32>} : memref<256x8xf32, #tpu.memory_space<vmem>>, vector<256x8xf32>,
    } else {
    }
    return
  }
  func.func @transform_0(%arg0: i32, %arg1: i32, %arg2: i32) -> (i32, i32) {
    %c0_i32 = arith.constant 0 : i32
    return %arg0, %arg2 : i32, i32
  }
  func.func @transform_1(%arg0: i32, %arg1: i32, %arg2: i32) -> (i32, i32) {
    %c0_i32 = arith.constant 0 : i32
    return %arg2, %arg1 : i32, i32
  }
  func.func @transform_2(%arg0: i32, %arg1: i32, %arg2: i32) -> (i32, i32) {
    %c0_i32 = arith.constant 0 : i32
    %c0_i32_0 = arith.constant 0 : i32
    return %c0_i32, %arg1 : i32, i32
  }
  func.func @transform_3(%arg0: i32, %arg1: i32, %arg2: i32) -> (i32, i32) {
    %c0_i32 = arith.constant 0 : i32
    return %arg0, %arg1 : i32, i32
  }
}

</mosaic_0001>

<llo_original>
// kernel: tpu_custom_call.1
$region0: #{tpu_custom_call.1}
  #allocation0 [shape = 'u32[]', space=smem, size = 0x4, offset = 0x4, fixed_abs, tag = 'smem constant byte address 0x4 - core index']
  #allocation1 [shape = 'u32[144,128]{1,0:T(1,128)}', space=vmem, size = 0x12000, scoped, tag = 'internal scratch']
  #allocation2 [shape = 'f32[256,8]{1,0:T(8,128)}', space=vmem, size = 0x20000, scoped, tag = 'scratch operand']
  %s0 = inlined_call_operand.hbm [shape: f32[17408,512], index: 0, kind: input, shape index: {}]
  %s1 = inlined_call_operand.vmem [shape: f32[512,8], index: 1, kind: input, shape index: {}]
  %s2 = inlined_call_operand.hbm [shape: f32[1,8], index: 2, kind: input, shape index: {}]
  %s3 = inlined_call_operand.vmem [shape: f32[17408,8], index: 3, kind: output, shape index: {}]
  %s4 = sld [smem:[#allocation0]]
  $region61: #{tpu_custom_call.1} parent=0
    _
  %s6 = ssub.s32 1, %s4
  %s7 = scalar_select 0, %s6, %s4
  $region1: #{tpu_custom_call.1} parent=0
    #allocation3 [shape = 'u8[1048576]{0}', space=vmem, size = 0x100000, scoped, tag = 'input window, operand 0']
    #allocation4 [shape = 's32[2]{0}', space=sflag, size = 0x8, scoped, tag = 'scoped memory for tpu_custom_call.1']
    #allocation5 [shape = 'u8[512]{0}', space=vmem, size = 0x400, scoped, tag = 'input window, operand 2, single buffered']
    #allocation6 [shape = 's32[1]{0}', space=sflag, size = 0x4, scoped, tag = 'scoped memory for tpu_custom_call.1']
    %8 = vsyncpa [#allocation4], 0
    %s9 = scalar_lea.sflag [#allocation4], 1
    %10 = vsyncpa %s9, 0
    %11 = vsyncpa [#allocation6], 0
    loop: start=0, step=1, limit=70
    $region2: #{tpu_custom_call.1} parent=1 // loop_pre_header
      _
    $region3: #{tpu_custom_call.1} parent=1 // loop_header
      %s13 = sphi 0, %s17
      %p14 = scmp.ge.s32.totalorder %s13, 70
      %s20 = sphi 0, %s39
      %s21 = sphi 0, %s35
      %s22 = sphi 0, %s31
      %s23 = sphi 0, %s20
      %s24 = sphi 0, %s21
      %s25 = sphi 0, %s22
      %s26 = sphi 0, %s23
      %s27 = sphi 0, %s24
      %s28 = sphi 0, %s25
      %s44 = sphi 0, %s46
      %s47 = sphi 0, %s44
      %s48 = sphi 0, %s47
      %s64 = sphi 0, %s48
      %s72 = sphi 0, %s74
      %s75 = sphi 0, %s72
      %s76 = sphi 0, %s75
      %s92 = sphi 0, %s76
      %s98 = sphi 0, %s100
      %s101 = sphi 0, %s98
      %s102 = sphi 0, %s101
      %s118 = sphi 0, %s102
      %s126 = sphi 0, %s128
      %s129 = sphi 0, %s126
      %s130 = sphi 0, %s129
      %s146 = sphi 0, %s130
    $region4: #{tpu_custom_call.1} parent=1 // loop_header_branch
      %16 = sbr.rel (%p14) target = $region8
    $region5: #{tpu_custom_call.1} parent=1 // loop_body
      %s18 = ssub.s32 %s13, 1
      %s19 = ssub.s32 %s13, 2
      %s29 = sadd.s32 1, %s22
      %p30 = scmp.ge.s32.totalorder %s29, 1
      %s31 = scalar_select %p30, 0, %s29
      %s32 = sadd.s32 1, %s21
      %s33 = scalar_select %p30, %s32, %s21
      %p34 = scmp.ge.s32.totalorder %s33, 1
      %s35 = scalar_select %p34, 0, %s33
      %s36 = sadd.s32 1, %s20
      %s37 = scalar_select %p34, %s36, %s20
      %p38 = scmp.ge.s32.totalorder %s37, 68
      %s39 = scalar_select %p38, 0, %s37
      %s40 = ssub.s32 %s20, %s39
      %s41 = ssub.s32 %s22, %s31
      %s42 = sor.u32 %s40, %s41
      %p43 = scmp.eq.s32.totalorder %s42, 0
      %s45 = sadd.s32 %s44, 1
      %s46 = scalar_select %p43, %s44, %s45
      %p49 = pneg %p43
      %p50 = scmp.eq.s32.totalorder %s13, 67
      %p51 = por %p49, %p50
      %p52 = scmp.ne.s32.totalorder %s44, %s47
      %p53 = scmp.eq.s32.totalorder %s13, 0
      %p54 = por %p52, %p53
      %p55 = scmp.ne.s32.totalorder %s44, %s47
      %p56 = scmp.eq.s32.totalorder %s18, 67
      %p57 = por %p55, %p56
      %p58 = scmp.ne.s32.totalorder %s47, %s48
      %p59 = scmp.eq.s32.totalorder %s18, 0
      %p60 = por %p58, %p59
      %p61 = scmp.ne.s32.totalorder %s47, %s48
      %p62 = scmp.eq.s32.totalorder %s19, 67
      %p63 = por %p61, %p62
      %p65 = scmp.ne.s32.totalorder %s48, %s64
      %p66 = scmp.eq.s32.totalorder %s19, 0
      %p67 = por %p65, %p66
      %s68 = ssub.s32 %s22, %s31
      %s69 = ssub.s32 %s21, %s35
      %s70 = sor.u32 %s68, %s69
      %p71 = scmp.eq.s32.totalorder %s70, 0
      %s73 = sadd.s32 %s72, 1
      %s74 = scalar_select %p71, %s72, %s73
      %p77 = pneg %p71
      %p78 = scmp.eq.s32.totalorder %s13, 67
      %p79 = por %p77, %p78
      %p80 = scmp.ne.s32.totalorder %s72, %s75
      %p81 = scmp.eq.s32.totalorder %s13, 0
      %p82 = por %p80, %p81
      %p83 = scmp.ne.s32.totalorder %s72, %s75
      %p84 = scmp.eq.s32.totalorder %s18, 67
      %p85 = por %p83, %p84
      %p86 = scmp.ne.s32.totalorder %s75, %s76
      %p87 = scmp.eq.s32.totalorder %s18, 0
      %p88 = por %p86, %p87
      %p89 = scmp.ne.s32.totalorder %s75, %s76
      %p90 = scmp.eq.s32.totalorder %s19, 67
      %p91 = por %p89, %p90
      %p93 = scmp.ne.s32.totalorder %s76, %s92
      %p94 = scmp.eq.s32.totalorder %s19, 0
      %p95 = por %p93, %p94
      %s96 = ssub.s32 %s21, %s35
      %p97 = scmp.eq.s32.totalorder %s96, 0
      %s99 = sadd.s32 %s98, 1
      %s100 = scalar_select %p97, %s98, %s99
      %p103 = pneg %p97
      %p104 = scmp.eq.s32.totalorder %s13, 67
      %p105 = por %p103, %p104
      %p106 = scmp.ne.s32.totalorder %s98, %s101
      %p107 = scmp.eq.s32.totalorder %s13, 0
      %p108 = por %p106, %p107
      %p109 = scmp.ne.s32.totalorder %s98, %s101
      %p110 = scmp.eq.s32.totalorder %s18, 67
      %p111 = por %p109, %p110
      %p112 = scmp.ne.s32.totalorder %s101, %s102
      %p113 = scmp.eq.s32.totalorder %s18, 0
      %p114 = por %p112, %p113
      %p115 = scmp.ne.s32.totalorder %s101, %s102
      %p116 = scmp.eq.s32.totalorder %s19, 67
      %p117 = por %p115, %p116
      %p119 = scmp.ne.s32.totalorder %s102, %s118
      %p120 = scmp.eq.s32.totalorder %s19, 0
      %p121 = por %p119, %p120
      %s122 = ssub.s32 %s20, %s39
      %s123 = ssub.s32 %s21, %s35
      %s124 = sor.u32 %s122, %s123
      %p125 = scmp.eq.s32.totalorder %s124, 0
      %s127 = sadd.s32 %s126, 1
      %s128 = scalar_select %p125, %s126, %s127
      %p131 = pneg %p125
      %p132 = scmp.eq.s32.totalorder %s13, 67
      %p133 = por %p131, %p132
      %p134 = scmp.ne.s32.totalorder %s126, %s129
      %p135 = scmp.eq.s32.totalorder %s13, 0
      %p136 = por %p134, %p135
      %p137 = scmp.ne.s32.totalorder %s126, %s129
      %p138 = scmp.eq.s32.totalorder %s18, 67
      %p139 = por %p137, %p138
      %p140 = scmp.ne.s32.totalorder %s129, %s130
      %p141 = scmp.eq.s32.totalorder %s18, 0
      %p142 = por %p140, %p141
      %p143 = scmp.ne.s32.totalorder %s129, %s130
      %p144 = scmp.eq.s32.totalorder %s19, 67
      %p145 = por %p143, %p144
      %p147 = scmp.ne.s32.totalorder %s130, %s146
      %p148 = scmp.eq.s32.totalorder %s19, 0
      %p149 = por %p147, %p148
      %p150 = scmp.le.s32.totalorder 1, %s13
      %p151 = scmp.lt.s32.totalorder %s13, 69
      %p152 = pnand %p150, %p151
      %p153 = pneg %p152
      // Predicated region
      $region9: #{tpu_custom_call.1} parent=5 // pred_check
        _
      $region10: #{tpu_custom_call.1} parent=5 // pred_check_branch
        %155 = sbr.rel (%p152) target = $region12
      $region11: #{tpu_custom_call.1} parent=5 // pred_region
        %s156 = ssub.s32 %s13, 1
        // Predicated region
        $region13: #{tpu_custom_call.1} parent=11 // pred_check
          %p157 = pneg %p88
        $region14: #{tpu_custom_call.1} parent=11 // pred_check_branch
          %159 = sbr.rel (%p157) target = $region16
        $region15: #{tpu_custom_call.1} parent=11 // pred_region
          %s160 = smul.u32 64, %s25
          %p161 = scmp.lt.s32.totalorder %s160, 63
          %s162 = scalar_select %p161, %s160, 63
          %p163 = scmp.lt.s32.totalorder %s24, 0
          %s164 = scalar_select %p163, %s24, 0
          %s165 = sadd.s32 %s164, %s162
          %s166 = smul.addr %s165, 8
          %s167 = scalar_lea.vmem %s1, %s166
          %s168 = smul.u32 64, %s25
        $region16: #{tpu_custom_call.1} parent=11 // pred_fallthru
          _
        // Predicated region
        $region17: #{tpu_custom_call.1} parent=11 // pred_check
          %p169 = pneg %p114
        $region18: #{tpu_custom_call.1} parent=11 // pred_check_branch
          %171 = sbr.rel (%p169) target = $region20
        $region19: #{tpu_custom_call.1} parent=11 // pred_region
          %s173 = ssub.s32 16, 16
          %174 = vsyncadd [#allocation6], %s173
          %s175 = smul.addr %s24, 16
          %s176 = scalar_lea.hbm %s2, %s175
          %s178 = sshll.u32 [#allocation5], 4
          %s179 = int_to_ptr.vmem [resolvable:$true] %s178
          %181 = dma.hbm_to_vmem [thread:$0]  %s176, 16, %s179, [#allocation6]
        $region20: #{tpu_custom_call.1} parent=11 // pred_fallthru
          _
      $region12: #{tpu_custom_call.1} parent=5 // pred_fallthru
        _
      %p182 = scmp.lt.s32.totalorder %s13, 68
      // Predicated region
      $region21: #{tpu_custom_call.1} parent=5 // pred_check
        %p183 = pneg %p182
      $region22: #{tpu_custom_call.1} parent=5 // pred_check_branch
        %185 = sbr.rel (%p183) target = $region24
      $region23: #{tpu_custom_call.1} parent=5 // pred_region
        // Predicated region
        $region25: #{tpu_custom_call.1} parent=23 // pred_check
          %p186 = pneg %p54
        $region26: #{tpu_custom_call.1} parent=23 // pred_check_branch
          %188 = sbr.rel (%p186) target = $region28
        $region27: #{tpu_custom_call.1} parent=23 // pred_region
          %s189 = sand.u32 %s44, 1
          %s190 = scalar_lea.sflag [#allocation4], %s189
          %s191 = sand.u32 %s44, 1
          %s192 = smul.addr %s191, 1024
          %s193 = scalar_lea.vmem [#allocation3], %s192
          %s194 = smul.u32 32, %s20
          %s195 = smul.u32 4, %s22
          %s197 = ssub.s32 16384, 16384
          %198 = vsyncadd %s190, %s197
          %s199 = smul.addr %s194, 4
          %s200 = sadd.s32 %s195, %s199
          %s201 = smul.addr %s200, 128
          %s202 = scalar_lea.hbm %s0, %s201
          %s203 = sshll.u32 %s193, 4
          %s204 = int_to_ptr.vmem [resolvable:$true] %s203
          %209 = dma.hbm_to_vmem [thread:$0]  %s202, 16384, %s204, %s190, 512, 512, 32
        $region28: #{tpu_custom_call.1} parent=23 // pred_fallthru
          _
      $region24: #{tpu_custom_call.1} parent=5 // pred_fallthru
        _
      %p210 = scmp.le.s32.totalorder 1, %s13
      %p211 = scmp.lt.s32.totalorder %s13, 69
      %p212 = pnand %p210, %p211
      %p213 = pneg %p212
      // Predicated region
      $region29: #{tpu_custom_call.1} parent=5 // pred_check
        _
      $region30: #{tpu_custom_call.1} parent=5 // pred_check_branch
        %215 = sbr.rel (%p212) target = $region32
      $region31: #{tpu_custom_call.1} parent=5 // pred_region
        %s216 = ssub.s32 %s13, 1
        %s217 = sand.u32 %s47, 1
        %s218 = scalar_lea.sflag [#allocation4], %s217
        %s219 = sand.u32 %s47, 1
        %s220 = smul.addr %s219, 1024
        %s221 = scalar_lea.vmem [#allocation3], %s220
        // Predicated region
        $region33: #{tpu_custom_call.1} parent=31 // pred_check
          %p222 = pneg %p60
        $region34: #{tpu_custom_call.1} parent=31 // pred_check_branch
          %224 = sbr.rel (%p222) target = $region36
        $region35: #{tpu_custom_call.1} parent=31 // pred_region
          %225 = dma.done %s218, 16384
        $region36: #{tpu_custom_call.1} parent=31 // pred_fallthru
          _
        // Predicated region
        $region37: #{tpu_custom_call.1} parent=31 // pred_check
          %p226 = pneg %p114
        $region38: #{tpu_custom_call.1} parent=31 // pred_check_branch
          %228 = sbr.rel (%p226) target = $region40
        $region39: #{tpu_custom_call.1} parent=31 // pred_region
          %229 = dma.done [#allocation6], 16
        $region40: #{tpu_custom_call.1} parent=31 // pred_fallthru
          _
        %s230 = sand.u32 %s47, 1
        %s231 = scalar_lea.sflag [#allocation4], %s230
        %s232 = sand.u32 %s47, 1
        %s233 = smul.addr %s232, 1024
        %s234 = scalar_lea.vmem [#allocation3], %s233
        %p235 = pneg %p60
        %p236 = pneg %p57
        %s237 = smul.u32 64, %s25
        %p238 = scmp.lt.s32.totalorder %s237, 63
        %s239 = scalar_select %p238, %s237, 63
        %p240 = scmp.lt.s32.totalorder %s24, 0
        %s241 = scalar_select %p240, %s24, 0
        %s242 = sadd.s32 %s241, %s239
        %s243 = smul.addr %s242, 8
        %s244 = scalar_lea.vmem %s1, %s243
        %p245 = pneg %p88
        %p246 = pneg %p85
        %p247 = pneg %p114
        %p248 = pneg %p111
        %p249 = pneg %p142
        %p250 = pneg %p139
        %s251 = smul.u32 32, %s23
        %p252 = scmp.lt.s32.totalorder %s251, 2175
        %s253 = scalar_select %p252, %s251, 2175
        %p254 = scmp.lt.s32.totalorder %s24, 0
        %s255 = scalar_select %p254, %s24, 0
        %s256 = sadd.s32 %s255, %s253
        %s257 = smul.addr %s256, 8
        %s258 = scalar_lea.vmem %s3, %s257
        %s259 = smul.u32 32, %s23
        %s260 = smul.u32 4, %s25
        %s261 = smul.u32 64, %s25
        %p262 = scmp.lt.s32.totalorder %s261, 63
        %s263 = scalar_select %p262, %s261, 63
        %p264 = scmp.lt.s32.totalorder %s24, 0
        %s265 = scalar_select %p264, %s24, 0
        %s266 = sadd.s32 %s265, %s263
        %s267 = smul.addr %s266, 8
        %s268 = scalar_lea.vmem %s1, %s267
        %s269 = smul.u32 64, %s25
        %s270 = smul.u32 32, %s23
        %p271 = scmp.lt.s32.totalorder %s270, 2175
        %s272 = scalar_select %p271, %s270, 2175
        %p273 = scmp.lt.s32.totalorder %s24, 0
        %s274 = scalar_select %p273, %s24, 0
        %s275 = sadd.s32 %s274, %s272
        %s276 = smul.addr %s275, 8
        %s277 = scalar_lea.vmem %s3, %s276
        %s278 = smul.u32 32, %s23
        %p279 = scmp.eq.s32.totalorder %s25, 0
        // Predicated region
        $region41: #{tpu_custom_call.1} parent=31 // pred_check
          %p280 = pneg %p279
        $region42: #{tpu_custom_call.1} parent=31 // pred_check_branch
          %282 = sbr.rel (%p280) target = $region44
        $region43: #{tpu_custom_call.1} parent=31 // pred_region
          %vm283 = vcmask 64512
          %284 = vst.msk [vmem:[#allocation2] sm:$0xff] %vm283, 0.0
          %285 = vst.msk [vmem:[#allocation2 + $0x8] sm:$0xff] %vm283, 0.0
          %286 = vst.msk [vmem:[#allocation2 + $0x10] sm:$0xff] %vm283, 0.0
          %287 = vst.msk [vmem:[#allocation2 + $0x18] sm:$0xff] %vm283, 0.0
          %288 = vst.msk [vmem:[#allocation2 + $0x20] sm:$0xff] %vm283, 0.0
          %289 = vst.msk [vmem:[#allocation2 + $0x28] sm:$0xff] %vm283, 0.0
          %290 = vst.msk [vmem:[#allocation2 + $0x30] sm:$0xff] %vm283, 0.0
          %291 = vst.msk [vmem:[#allocation2 + $0x38] sm:$0xff] %vm283, 0.0
          %292 = vst.msk [vmem:[#allocation2 + $0x40] sm:$0xff] %vm283, 0.0
          %293 = vst.msk [vmem:[#allocation2 + $0x48] sm:$0xff] %vm283, 0.0
          %294 = vst.msk [vmem:[#allocation2 + $0x50] sm:$0xff] %vm283, 0.0
          %295 = vst.msk [vmem:[#allocation2 + $0x58] sm:$0xff] %vm283, 0.0
          %296 = vst.msk [vmem:[#allocation2 + $0x60] sm:$0xff] %vm283, 0.0
          %297 = vst.msk [vmem:[#allocation2 + $0x68] sm:$0xff] %vm283, 0.0
          %298 = vst.msk [vmem:[#allocation2 + $0x70] sm:$0xff] %vm283, 0.0
          %299 = vst.msk [vmem:[#allocation2 + $0x78] sm:$0xff] %vm283, 0.0
          %300 = vst.msk [vmem:[#allocation2 + $0x80] sm:$0xff] %vm283, 0.0
          %301 = vst.msk [vmem:[#allocation2 + $0x88] sm:$0xff] %vm283, 0.0
          %302 = vst.msk [vmem:[#allocation2 + $0x90] sm:$0xff] %vm283, 0.0
          %303 = vst.msk [vmem:[#allocation2 + $0x98] sm:$0xff] %vm283, 0.0
          %304 = vst.msk [vmem:[#allocation2 + $0xa0] sm:$0xff] %vm283, 0.0
          %305 = vst.msk [vmem:[#allocation2 + $0xa8] sm:$0xff] %vm283, 0.0
          %306 = vst.msk [vmem:[#allocation2 + $0xb0] sm:$0xff] %vm283, 0.0
          %307 = vst.msk [vmem:[#allocation2 + $0xb8] sm:$0xff] %vm283, 0.0
          %308 = vst.msk [vmem:[#allocation2 + $0xc0] sm:$0xff] %vm283, 0.0
          %309 = vst.msk [vmem:[#allocation2 + $0xc8] sm:$0xff] %vm283, 0.0
          %310 = vst.msk [vmem:[#allocation2 + $0xd0] sm:$0xff] %vm283, 0.0
          %311 = vst.msk [vmem:[#allocation2 + $0xd8] sm:$0xff] %vm283, 0.0
          %312 = vst.msk [vmem:[#allocation2 + $0xe0] sm:$0xff] %vm283, 0.0
          %313 = vst.msk [vmem:[#allocation2 + $0xe8] sm:$0xff] %vm283, 0.0
          %314 = vst.msk [vmem:[#allocation2 + $0xf0] sm:$0xff] %vm283, 0.0
          %315 = vst.msk [vmem:[#allocation2 + $0xf8] sm:$0xff] %vm283, 0.0
        $region44: #{tpu_custom_call.1} parent=31 // pred_fallthru
          _
        %v316 = vld [vmem:[#allocation2] sm:$0xff]
        %v317 = vld [vmem:[#allocation2 + $0x8] sm:$0xff]
        %v318 = vld [vmem:[#allocation2 + $0x10] sm:$0xff]
        %v319 = vld [vmem:[#allocation2 + $0x18] sm:$0xff]
        %v320 = vld [vmem:[#allocation2 + $0x20] sm:$0xff]
        %v321 = vld [vmem:[#allocation2 + $0x28] sm:$0xff]
        %v322 = vld [vmem:[#allocation2 + $0x30] sm:$0xff]
        %v323 = vld [vmem:[#allocation2 + $0x38] sm:$0xff]
        %v324 = vld [vmem:[#allocation2 + $0x40] sm:$0xff]
        %v325 = vld [vmem:[#allocation2 + $0x48] sm:$0xff]
        %v326 = vld [vmem:[#allocation2 + $0x50] sm:$0xff]
        %v327 = vld [vmem:[#allocation2 + $0x58] sm:$0xff]
        %v328 = vld [vmem:[#allocation2 + $0x60] sm:$0xff]
        %v329 = vld [vmem:[#allocation2 + $0x68] sm:$0xff]
        %v330 = vld [vmem:[#allocation2 + $0x70] sm:$0xff]
        %v331 = vld [vmem:[#allocation2 + $0x78] sm:$0xff]
        %v332 = vld [vmem:[#allocation2 + $0x80] sm:$0xff]
        %v333 = vld [vmem:[#allocation2 + $0x88] sm:$0xff]
        %v334 = vld [vmem:[#allocation2 + $0x90] sm:$0xff]
        %v335 = vld [vmem:[#allocation2 + $0x98] sm:$0xff]
        %v336 = vld [vmem:[#allocation2 + $0xa0] sm:$0xff]
        %v337 = vld [vmem:[#allocation2 + $0xa8] sm:$0xff]
        %v338 = vld [vmem:[#allocation2 + $0xb0] sm:$0xff]
        %v339 = vld [vmem:[#allocation2 + $0xb8] sm:$0xff]
        %v340 = vld [vmem:[#allocation2 + $0xc0] sm:$0xff]
        %v341 = vld [vmem:[#allocation2 + $0xc8] sm:$0xff]
        %v342 = vld [vmem:[#allocation2 + $0xd0] sm:$0xff]
        %v343 = vld [vmem:[#allocation2 + $0xd8] sm:$0xff]
        %v344 = vld [vmem:[#allocation2 + $0xe0] sm:$0xff]
        %v345 = vld [vmem:[#allocation2 + $0xe8] sm:$0xff]
        %v346 = vld [vmem:[#allocation2 + $0xf0] sm:$0xff]
        %v347 = vld [vmem:[#allocation2 + $0xf8] sm:$0xff]
        %v348 = vld [vmem:[%s221] sm:$0xff]
        %v349 = vld [vmem:[%s221 + $0x8] sm:$0xff]
        %v350 = vld [vmem:[%s221 + $0x10] sm:$0xff]
        %v351 = vld [vmem:[%s221 + $0x18] sm:$0xff]
        %v352 = vld [vmem:[%s221 + $0x20] sm:$0xff]
        %v353 = vld [vmem:[%s221 + $0x28] sm:$0xff]
        %v354 = vld [vmem:[%s221 + $0x30] sm:$0xff]
        %v355 = vld [vmem:[%s221 + $0x38] sm:$0xff]
        %v356 = vld [vmem:[%s221 + $0x40] sm:$0xff]
        %v357 = vld [vmem:[%s221 + $0x48] sm:$0xff]
        %v358 = vld [vmem:[%s221 + $0x50] sm:$0xff]
        %v359 = vld [vmem:[%s221 + $0x58] sm:$0xff]
        %v360 = vld [vmem:[%s221 + $0x60] sm:$0xff]
        %v361 = vld [vmem:[%s221 + $0x68] sm:$0xff]
        %v362 = vld [vmem:[%s221 + $0x70] sm:$0xff]
        %v363 = vld [vmem:[%s221 + $0x78] sm:$0xff]
        %v364 = vld [vmem:[%s221 + $0x80] sm:$0xff]
        %v365 = vld [vmem:[%s221 + $0x88] sm:$0xff]
        %v366 = vld [vmem:[%s221 + $0x90] sm:$0xff]
        %v367 = vld [vmem:[%s221 + $0x98] sm:$0xff]
        %v368 = vld [vmem:[%s221 + $0xa0] sm:$0xff]
        %v369 = vld [vmem:[%s221 + $0xa8] sm:$0xff]
        %v370 = vld [vmem:[%s221 + $0xb0] sm:$0xff]
        %v371 = vld [vmem:[%s221 + $0xb8] sm:$0xff]
        %v372 = vld [vmem:[%s221 + $0xc0] sm:$0xff]
        %v373 = vld [vmem:[%s221 + $0xc8] sm:$0xff]
        %v374 = vld [vmem:[%s221 + $0xd0] sm:$0xff]
        %v375 = vld [vmem:[%s221 + $0xd8] sm:$0xff]
        %v376 = vld [vmem:[%s221 + $0xe0] sm:$0xff]
        %v377 = vld [vmem:[%s221 + $0xe8] sm:$0xff]
        %v378 = vld [vmem:[%s221 + $0xf0] sm:$0xff]
        %v379 = vld [vmem:[%s221 + $0xf8] sm:$0xff]
        %v380 = vld [vmem:[%s221 + $0x100] sm:$0xff]
        %v381 = vld [vmem:[%s221 + $0x108] sm:$0xff]
        %v382 = vld [vmem:[%s221 + $0x110] sm:$0xff]
        %v383 = vld [vmem:[%s221 + $0x118] sm:$0xff]
        %v384 = vld [vmem:[%s221 + $0x120] sm:$0xff]
        %v385 = vld [vmem:[%s221 + $0x128] sm:$0xff]
        %v386 = vld [vmem:[%s221 + $0x130] sm:$0xff]
        %v387 = vld [vmem:[%s221 + $0x138] sm:$0xff]
        %v388 = vld [vmem:[%s221 + $0x140] sm:$0xff]
        %v389 = vld [vmem:[%s221 + $0x148] sm:$0xff]
        %v390 = vld [vmem:[%s221 + $0x150] sm:$0xff]
        %v391 = vld [vmem:[%s221 + $0x158] sm:$0xff]
        %v392 = vld [vmem:[%s221 + $0x160] sm:$0xff]
        %v393 = vld [vmem:[%s221 + $0x168] sm:$0xff]
        %v394 = vld [vmem:[%s221 + $0x170] sm:$0xff]
        %v395 = vld [vmem:[%s221 + $0x178] sm:$0xff]
        %v396 = vld [vmem:[%s221 + $0x180] sm:$0xff]
        %v397 = vld [vmem:[%s221 + $0x188] sm:$0xff]
        %v398 = vld [vmem:[%s221 + $0x190] sm:$0xff]
        %v399 = vld [vmem:[%s221 + $0x198] sm:$0xff]
        %v400 = vld [vmem:[%s221 + $0x1a0] sm:$0xff]
        %v401 = vld [vmem:[%s221 + $0x1a8] sm:$0xff]
        %v402 = vld [vmem:[%s221 + $0x1b0] sm:$0xff]
        %v403 = vld [vmem:[%s221 + $0x1b8] sm:$0xff]
        %v404 = vld [vmem:[%s221 + $0x1c0] sm:$0xff]
        %v405 = vld [vmem:[%s221 + $0x1c8] sm:$0xff]
        %v406 = vld [vmem:[%s221 + $0x1d0] sm:$0xff]
        %v407 = vld [vmem:[%s221 + $0x1d8] sm:$0xff]
        %v408 = vld [vmem:[%s221 + $0x1e0] sm:$0xff]
        %v409 = vld [vmem:[%s221 + $0x1e8] sm:$0xff]
        %v410 = vld [vmem:[%s221 + $0x1f0] sm:$0xff]
        %v411 = vld [vmem:[%s221 + $0x1f8] sm:$0xff]
        %v412 = vld [vmem:[%s221 + $0x200] sm:$0xff]
        %v413 = vld [vmem:[%s221 + $0x208] sm:$0xff]
        %v414 = vld [vmem:[%s221 + $0x210] sm:$0xff]
        %v415 = vld [vmem:[%s221 + $0x218] sm:$0xff]
        %v416 = vld [vmem:[%s221 + $0x220] sm:$0xff]
        %v417 = vld [vmem:[%s221 + $0x228] sm:$0xff]
        %v418 = vld [vmem:[%s221 + $0x230] sm:$0xff]
        %v419 = vld [vmem:[%s221 + $0x238] sm:$0xff]
        %v420 = vld [vmem:[%s221 + $0x240] sm:$0xff]
        %v421 = vld [vmem:[%s221 + $0x248] sm:$0xff]
        %v422 = vld [vmem:[%s221 + $0x250] sm:$0xff]
        %v423 = vld [vmem:[%s221 + $0x258] sm:$0xff]
        %v424 = vld [vmem:[%s221 + $0x260] sm:$0xff]
        %v425 = vld [vmem:[%s221 + $0x268] sm:$0xff]
        %v426 = vld [vmem:[%s221 + $0x270] sm:$0xff]
        %v427 = vld [vmem:[%s221 + $0x278] sm:$0xff]
        %v428 = vld [vmem:[%s221 + $0x280] sm:$0xff]
        %v429 = vld [vmem:[%s221 + $0x288] sm:$0xff]
        %v430 = vld [vmem:[%s221 + $0x290] sm:$0xff]
        %v431 = vld [vmem:[%s221 + $0x298] sm:$0xff]
        %v432 = vld [vmem:[%s221 + $0x2a0] sm:$0xff]
        %v433 = vld [vmem:[%s221 + $0x2a8] sm:$0xff]
        %v434 = vld [vmem:[%s221 + $0x2b0] sm:$0xff]
        %v435 = vld [vmem:[%s221 + $0x2b8] sm:$0xff]
        %v436 = vld [vmem:[%s221 + $0x2c0] sm:$0xff]
        %v437 = vld [vmem:[%s221 + $0x2c8] sm:$0xff]
        %v438 = vld [vmem:[%s221 + $0x2d0] sm:$0xff]
        %v439 = vld [vmem:[%s221 + $0x2d8] sm:$0xff]
        %v440 = vld [vmem:[%s221 + $0x2e0] sm:$0xff]
        %v441 = vld [vmem:[%s221 + $0x2e8] sm:$0xff]
        %v442 = vld [vmem:[%s221 + $0x2f0] sm:$0xff]
        %v443 = vld [vmem:[%s221 + $0x2f8] sm:$0xff]
        %v444 = vld [vmem:[%s221 + $0x300] sm:$0xff]
        %v445 = vld [vmem:[%s221 + $0x308] sm:$0xff]
        %v446 = vld [vmem:[%s221 + $0x310] sm:$0xff]
        %v447 = vld [vmem:[%s221 + $0x318] sm:$0xff]
        %v448 = vld [vmem:[%s221 + $0x320] sm:$0xff]
        %v449 = vld [vmem:[%s221 + $0x328] sm:$0xff]
        %v450 = vld [vmem:[%s221 + $0x330] sm:$0xff]
        %v451 = vld [vmem:[%s221 + $0x338] sm:$0xff]
        %v452 = vld [vmem:[%s221 + $0x340] sm:$0xff]
        %v453 = vld [vmem:[%s221 + $0x348] sm:$0xff]
        %v454 = vld [vmem:[%s221 + $0x350] sm:$0xff]
        %v455 = vld [vmem:[%s221 + $0x358] sm:$0xff]
        %v456 = vld [vmem:[%s221 + $0x360] sm:$0xff]
        %v457 = vld [vmem:[%s221 + $0x368] sm:$0xff]
        %v458 = vld [vmem:[%s221 + $0x370] sm:$0xff]
        %v459 = vld [vmem:[%s221 + $0x378] sm:$0xff]
        %v460 = vld [vmem:[%s221 + $0x380] sm:$0xff]
        %v461 = vld [vmem:[%s221 + $0x388] sm:$0xff]
        %v462 = vld [vmem:[%s221 + $0x390] sm:$0xff]
        %v463 = vld [vmem:[%s221 + $0x398] sm:$0xff]
        %v464 = vld [vmem:[%s221 + $0x3a0] sm:$0xff]
        %v465 = vld [vmem:[%s221 + $0x3a8] sm:$0xff]
        %v466 = vld [vmem:[%s221 + $0x3b0] sm:$0xff]
        %v467 = vld [vmem:[%s221 + $0x3b8] sm:$0xff]
        %v468 = vld [vmem:[%s221 + $0x3c0] sm:$0xff]
        %v469 = vld [vmem:[%s221 + $0x3c8] sm:$0xff]
        %v470 = vld [vmem:[%s221 + $0x3d0] sm:$0xff]
        %v471 = vld [vmem:[%s221 + $0x3d8] sm:$0xff]
        %v472 = vld [vmem:[%s221 + $0x3e0] sm:$0xff]
        %v473 = vld [vmem:[%s221 + $0x3e8] sm:$0xff]
        %v474 = vld [vmem:[%s221 + $0x3f0] sm:$0xff]
        %v475 = vld [vmem:[%s221 + $0x3f8] sm:$0xff]
        %v476 = vld [vmem:[%s268] sm:$0xff]
        %v477 = vld [vmem:[%s268 + $0x8] sm:$0xff]
        %v478 = vld [vmem:[%s268 + $0x10] sm:$0xff]
        %v479 = vld [vmem:[%s268 + $0x18] sm:$0xff]
        %v480 = vld [vmem:[%s268 + $0x20] sm:$0xff]
        %v481 = vld [vmem:[%s268 + $0x28] sm:$0xff]
        %v482 = vld [vmem:[%s268 + $0x30] sm:$0xff]
        %v483 = vld [vmem:[%s268 + $0x38] sm:$0xff]
        %v484 = vld [vmem:[%s268 + $0x40] sm:$0xff]
        %v485 = vld [vmem:[%s268 + $0x48] sm:$0xff]
        %v486 = vld [vmem:[%s268 + $0x50] sm:$0xff]
        %v487 = vld [vmem:[%s268 + $0x58] sm:$0xff]
        %v488 = vld [vmem:[%s268 + $0x60] sm:$0xff]
        %v489 = vld [vmem:[%s268 + $0x68] sm:$0xff]
        %v490 = vld [vmem:[%s268 + $0x70] sm:$0xff]
        %v491 = vld [vmem:[%s268 + $0x78] sm:$0xff]
        %v492 = vld [vmem:[%s268 + $0x80] sm:$0xff]
        %v493 = vld [vmem:[%s268 + $0x88] sm:$0xff]
        %v494 = vld [vmem:[%s268 + $0x90] sm:$0xff]
        %v495 = vld [vmem:[%s268 + $0x98] sm:$0xff]
        %v496 = vld [vmem:[%s268 + $0xa0] sm:$0xff]
        %v497 = vld [vmem:[%s268 + $0xa8] sm:$0xff]
        %v498 = vld [vmem:[%s268 + $0xb0] sm:$0xff]
        %v499 = vld [vmem:[%s268 + $0xb8] sm:$0xff]
        %v500 = vld [vmem:[%s268 + $0xc0] sm:$0xff]
        %v501 = vld [vmem:[%s268 + $0xc8] sm:$0xff]
        %v502 = vld [vmem:[%s268 + $0xd0] sm:$0xff]
        %v503 = vld [vmem:[%s268 + $0xd8] sm:$0xff]
        %v504 = vld [vmem:[%s268 + $0xe0] sm:$0xff]
        %v505 = vld [vmem:[%s268 + $0xe8] sm:$0xff]
        %v506 = vld [vmem:[%s268 + $0xf0] sm:$0xff]
        %v507 = vld [vmem:[%s268 + $0xf8] sm:$0xff]
        %v508 = vld [vmem:[%s268 + $0x100] sm:$0xff]
        %v509 = vld [vmem:[%s268 + $0x108] sm:$0xff]
        %v510 = vld [vmem:[%s268 + $0x110] sm:$0xff]
        %v511 = vld [vmem:[%s268 + $0x118] sm:$0xff]
        %v512 = vld [vmem:[%s268 + $0x120] sm:$0xff]
        %v513 = vld [vmem:[%s268 + $0x128] sm:$0xff]
        %v514 = vld [vmem:[%s268 + $0x130] sm:$0xff]
        %v515 = vld [vmem:[%s268 + $0x138] sm:$0xff]
        %v516 = vld [vmem:[%s268 + $0x140] sm:$0xff]
        %v517 = vld [vmem:[%s268 + $0x148] sm:$0xff]
        %v518 = vld [vmem:[%s268 + $0x150] sm:$0xff]
        %v519 = vld [vmem:[%s268 + $0x158] sm:$0xff]
        %v520 = vld [vmem:[%s268 + $0x160] sm:$0xff]
        %v521 = vld [vmem:[%s268 + $0x168] sm:$0xff]
        %v522 = vld [vmem:[%s268 + $0x170] sm:$0xff]
        %v523 = vld [vmem:[%s268 + $0x178] sm:$0xff]
        %v524 = vld [vmem:[%s268 + $0x180] sm:$0xff]
        %v525 = vld [vmem:[%s268 + $0x188] sm:$0xff]
        %v526 = vld [vmem:[%s268 + $0x190] sm:$0xff]
        %v527 = vld [vmem:[%s268 + $0x198] sm:$0xff]
        %v528 = vld [vmem:[%s268 + $0x1a0] sm:$0xff]
        %v529 = vld [vmem:[%s268 + $0x1a8] sm:$0xff]
        %v530 = vld [vmem:[%s268 + $0x1b0] sm:$0xff]
        %v531 = vld [vmem:[%s268 + $0x1b8] sm:$0xff]
        %v532 = vld [vmem:[%s268 + $0x1c0] sm:$0xff]
        %v533 = vld [vmem:[%s268 + $0x1c8] sm:$0xff]
        %v534 = vld [vmem:[%s268 + $0x1d0] sm:$0xff]
        %v535 = vld [vmem:[%s268 + $0x1d8] sm:$0xff]
        %v536 = vld [vmem:[%s268 + $0x1e0] sm:$0xff]
        %v537 = vld [vmem:[%s268 + $0x1e8] sm:$0xff]
        %v538 = vld [vmem:[%s268 + $0x1f0] sm:$0xff]
        %v539 = vld [vmem:[%s268 + $0x1f8] sm:$0xff]
        %540 = vmatprep.subr.mxu0 0.0
        %541 = vmatpush1.msra.mxu0 %v491
        %542 = vmatprep.subr.mxu0 0.0
        %543 = vmatpush1.msra.mxu0 %v490
        %544 = vmatprep.subr.mxu0 0.0
        %545 = vmatpush1.msra.mxu0 %v489
        %546 = vmatprep.subr.mxu0 0.0
        %547 = vmatpush1.msra.mxu0 %v488
        %548 = vmatprep.subr.mxu0 0.0
        %549 = vmatpush1.msra.mxu0 %v487
        %550 = vmatprep.subr.mxu0 0.0
        %551 = vmatpush1.msra.mxu0 %v486
        %552 = vmatprep.subr.mxu0 0.0
        %553 = vmatpush1.msra.mxu0 %v485
        %554 = vmatprep.subr.mxu0 0.0
        %555 = vmatpush1.msra.mxu0 %v484
        %556 = vmatprep.subr.mxu0 0.0
        %557 = vmatpush1.msra.mxu0 %v483
        %558 = vmatprep.subr.mxu0 0.0
        %559 = vmatpush1.msra.mxu0 %v482
        %560 = vmatprep.subr.mxu0 0.0
        %561 = vmatpush1.msra.mxu0 %v481
        %562 = vmatprep.subr.mxu0 0.0
        %563 = vmatpush1.msra.mxu0 %v480
        %564 = vmatprep.subr.mxu0 0.0
        %565 = vmatpush1.msra.mxu0 %v479
        %566 = vmatprep.subr.mxu0 0.0
        %567 = vmatpush1.msra.mxu0 %v478
        %568 = vmatprep.subr.mxu0 0.0
        %569 = vmatpush1.msra.mxu0 %v477
        %570 = vmatprep.subr.mxu0 0.0
        %571 = vmatpush1.msra.mxu0 %v476
        %572 = vmatprep.subr.mxu0 0.0
        %573 = vmatpush2.msra.mxu0 %v507
        %574 = vmatprep.subr.mxu0 0.0
        %575 = vmatpush2.msra.mxu0 %v506
        %576 = vmatprep.subr.mxu0 0.0
        %577 = vmatpush2.msra.mxu0 %v505
        %578 = vmatprep.subr.mxu0 0.0
        %579 = vmatpush2.msra.mxu0 %v504
        %580 = vmatprep.subr.mxu0 0.0
        %581 = vmatpush2.msra.mxu0 %v503
        %582 = vmatprep.subr.mxu0 0.0
        %583 = vmatpush2.msra.mxu0 %v502
        %584 = vmatprep.subr.mxu0 0.0
        %585 = vmatpush2.msra.mxu0 %v501
        %586 = vmatprep.subr.mxu0 0.0
        %587 = vmatpush2.msra.mxu0 %v500
        %588 = vmatprep.subr.mxu0 0.0
        %589 = vmatpush2.msra.mxu0 %v499
        %590 = vmatprep.subr.mxu0 0.0
        %591 = vmatpush2.msra.mxu0 %v498
        %592 = vmatprep.subr.mxu0 0.0
        %593 = vmatpush2.msra.mxu0 %v497
        %594 = vmatprep.subr.mxu0 0.0
        %595 = vmatpush2.msra.mxu0 %v496
        %596 = vmatprep.subr.mxu0 0.0
        %597 = vmatpush2.msra.mxu0 %v495
        %598 = vmatprep.subr.mxu0 0.0
        %599 = vmatpush2.msra.mxu0 %v494
        %600 = vmatprep.subr.mxu0 0.0
        %601 = vmatpush2.msra.mxu0 %v493
        %602 = vmatprep.subr.mxu0 0.0
        %603 = vmatpush2.msra.mxu0 %v492
        %604 = vmatprep.mubr.f32.mxu0 %v349
        %605 = vmatmul.mubr.f32.gmra.mxu0 %v348
        %v606 = vpop.f32.mrf.mxu0
        %v607 = vadd.f32 0.0, %v606
        %v608 = vpop.f32.mrf.mxu0
        %609 = vmatprep.mubr.f32.mxu0 %v353
        %610 = vmatmul.mubr.f32.gmra.mxu0 %v352
        %v611 = vpop.f32.mrf.mxu0
        %v612 = vadd.f32 0.0, %v611
        %v613 = vpop.f32.mrf.mxu0
        %614 = vmatprep.mubr.f32.mxu0 %v357
        %615 = vmatmul.mubr.f32.gmra.mxu0 %v356
        %v616 = vpop.f32.mrf.mxu0
        %v617 = vadd.f32 0.0, %v616
        %v618 = vpop.f32.mrf.mxu0
        %619 = vmatprep.mubr.f32.mxu0 %v361
        %620 = vmatmul.mubr.f32.gmra.mxu0 %v360
        %v621 = vpop.f32.mrf.mxu0
        %v622 = vadd.f32 0.0, %v621
        %v623 = vpop.f32.mrf.mxu0
        %624 = vmatprep.mubr.f32.mxu0 %v365
        %625 = vmatmul.mubr.f32.gmra.mxu0 %v364
        %v626 = vpop.f32.mrf.mxu0
        %v627 = vadd.f32 0.0, %v626
        %v628 = vpop.f32.mrf.mxu0
        %629 = vmatprep.mubr.f32.mxu0 %v369
        %630 = vmatmul.mubr.f32.gmra.mxu0 %v368
        %v631 = vpop.f32.mrf.mxu0
        %v632 = vadd.f32 0.0, %v631
        %v633 = vpop.f32.mrf.mxu0
        %634 = vmatprep.mubr.f32.mxu0 %v373
        %635 = vmatmul.mubr.f32.gmra.mxu0 %v372
        %v636 = vpop.f32.mrf.mxu0
        %v637 = vadd.f32 0.0, %v636
        %v638 = vpop.f32.mrf.mxu0
        %639 = vmatprep.mubr.f32.mxu0 %v377
        %640 = vmatmul.mubr.f32.gmra.mxu0 %v376
        %v641 = vpop.f32.mrf.mxu0
        %v642 = vadd.f32 0.0, %v641
        %v643 = vpop.f32.mrf.mxu0
        %644 = vmatprep.mubr.f32.mxu0 %v381
        %645 = vmatmul.mubr.f32.gmra.mxu0 %v380
        %v646 = vpop.f32.mrf.mxu0
        %v647 = vadd.f32 0.0, %v646
        %v648 = vpop.f32.mrf.mxu0
        %649 = vmatprep.mubr.f32.mxu0 %v385
        %650 = vmatmul.mubr.f32.gmra.mxu0 %v384
        %v651 = vpop.f32.mrf.mxu0
        %v652 = vadd.f32 0.0, %v651
        %v653 = vpop.f32.mrf.mxu0
        %654 = vmatprep.mubr.f32.mxu0 %v389
        %655 = vmatmul.mubr.f32.gmra.mxu0 %v388
        %v656 = vpop.f32.mrf.mxu0
        %v657 = vadd.f32 0.0, %v656
        %v658 = vpop.f32.mrf.mxu0
        %659 = vmatprep.mubr.f32.mxu0 %v393
        %660 = vmatmul.mubr.f32.gmra.mxu0 %v392
        %v661 = vpop.f32.mrf.mxu0
        %v662 = vadd.f32 0.0, %v661
        %v663 = vpop.f32.mrf.mxu0
        %664 = vmatprep.mubr.f32.mxu0 %v397
        %665 = vmatmul.mubr.f32.gmra.mxu0 %v396
        %v666 = vpop.f32.mrf.mxu0
        %v667 = vadd.f32 0.0, %v666
        %v668 = vpop.f32.mrf.mxu0
        %669 = vmatprep.mubr.f32.mxu0 %v401
        %670 = vmatmul.mubr.f32.gmra.mxu0 %v400
        %v671 = vpop.f32.mrf.mxu0
        %v672 = vadd.f32 0.0, %v671
        %v673 = vpop.f32.mrf.mxu0
        %674 = vmatprep.mubr.f32.mxu0 %v405
        %675 = vmatmul.mubr.f32.gmra.mxu0 %v404
        %v676 = vpop.f32.mrf.mxu0
        %v677 = vadd.f32 0.0, %v676
        %v678 = vpop.f32.mrf.mxu0
        %679 = vmatprep.mubr.f32.mxu0 %v409
        %680 = vmatmul.mubr.f32.gmra.mxu0 %v408
        %v681 = vpop.f32.mrf.mxu0
        %v682 = vadd.f32 0.0, %v681
        %v683 = vpop.f32.mrf.mxu0
        %684 = vmatprep.mubr.f32.mxu0 %v413
        %685 = vmatmul.mubr.f32.gmra.mxu0 %v412
        %v686 = vpop.f32.mrf.mxu0
        %v687 = vadd.f32 0.0, %v686
        %v688 = vpop.f32.mrf.mxu0
        %689 = vmatprep.mubr.f32.mxu0 %v417
        %690 = vmatmul.mubr.f32.gmra.mxu0 %v416
        %v691 = vpop.f32.mrf.mxu0
        %v692 = vadd.f32 0.0, %v691
        %v693 = vpop.f32.mrf.mxu0
        %694 = vmatprep.mubr.f32.mxu0 %v421
        %695 = vmatmul.mubr.f32.gmra.mxu0 %v420
        %v696 = vpop.f32.mrf.mxu0
        %v697 = vadd.f32 0.0, %v696
        %v698 = vpop.f32.mrf.mxu0
        %699 = vmatprep.mubr.f32.mxu0 %v425
        %700 = vmatmul.mubr.f32.gmra.mxu0 %v424
        %v701 = vpop.f32.mrf.mxu0
        %v702 = vadd.f32 0.0, %v701
        %v703 = vpop.f32.mrf.mxu0
        %704 = vmatprep.mubr.f32.mxu0 %v429
        %705 = vmatmul.mubr.f32.gmra.mxu0 %v428
        %v706 = vpop.f32.mrf.mxu0
        %v707 = vadd.f32 0.0, %v706
        %v708 = vpop.f32.mrf.mxu0
        %709 = vmatprep.mubr.f32.mxu0 %v433
        %710 = vmatmul.mubr.f32.gmra.mxu0 %v432
        %v711 = vpop.f32.mrf.mxu0
        %v712 = vadd.f32 0.0, %v711
        %v713 = vpop.f32.mrf.mxu0
        %714 = vmatprep.mubr.f32.mxu0 %v437
        %715 = vmatmul.mubr.f32.gmra.mxu0 %v436
        %v716 = vpop.f32.mrf.mxu0
        %v717 = vadd.f32 0.0, %v716
        %v718 = vpop.f32.mrf.mxu0
        %719 = vmatprep.mubr.f32.mxu0 %v441
        %720 = vmatmul.mubr.f32.gmra.mxu0 %v440
        %v721 = vpop.f32.mrf.mxu0
        %v722 = vadd.f32 0.0, %v721
        %v723 = vpop.f32.mrf.mxu0
        %724 = vmatprep.mubr.f32.mxu0 %v445
        %725 = vmatmul.mubr.f32.gmra.mxu0 %v444
        %v726 = vpop.f32.mrf.mxu0
        %v727 = vadd.f32 0.0, %v726
        %v728 = vpop.f32.mrf.mxu0
        %729 = vmatprep.mubr.f32.mxu0 %v449
        %730 = vmatmul.mubr.f32.gmra.mxu0 %v448
        %v731 = vpop.f32.mrf.mxu0
        %v732 = vadd.f32 0.0, %v731
        %v733 = vpop.f32.mrf.mxu0
        %734 = vmatprep.mubr.f32.mxu0 %v453
        %735 = vmatmul.mubr.f32.gmra.mxu0 %v452
        %v736 = vpop.f32.mrf.mxu0
        %v737 = vadd.f32 0.0, %v736
        %v738 = vpop.f32.mrf.mxu0
        %739 = vmatprep.mubr.f32.mxu0 %v457
        %740 = vmatmul.mubr.f32.gmra.mxu0 %v456
        %v741 = vpop.f32.mrf.mxu0
        %v742 = vadd.f32 0.0, %v741
        %v743 = vpop.f32.mrf.mxu0
        %744 = vmatprep.mubr.f32.mxu0 %v461
        %745 = vmatmul.mubr.f32.gmra.mxu0 %v460
        %v746 = vpop.f32.mrf.mxu0
        %v747 = vadd.f32 0.0, %v746
        %v748 = vpop.f32.mrf.mxu0
        %749 = vmatprep.mubr.f32.mxu0 %v465
        %750 = vmatmul.mubr.f32.gmra.mxu0 %v464
        %v751 = vpop.f32.mrf.mxu0
        %v752 = vadd.f32 0.0, %v751
        %v753 = vpop.f32.mrf.mxu0
        %754 = vmatprep.mubr.f32.mxu0 %v469
        %755 = vmatmul.mubr.f32.gmra.mxu0 %v468
        %v756 = vpop.f32.mrf.mxu0
        %v757 = vadd.f32 0.0, %v756
        %v758 = vpop.f32.mrf.mxu0
        %759 = vmatprep.mubr.f32.mxu0 %v473
        %760 = vmatmul.mubr.f32.gmra.mxu0 %v472
        %v761 = vpop.f32.mrf.mxu0
        %v762 = vadd.f32 0.0, %v761
        %v763 = vpop.f32.mrf.mxu0
        %764 = vdwg.mxu0
        %765 = vmatprep.subr.mxu0 0.0
        %766 = vmatpush1.msra.mxu0 %v523
        %767 = vmatprep.subr.mxu0 0.0
        %768 = vmatpush1.msra.mxu0 %v522
        %769 = vmatprep.subr.mxu0 0.0
        %770 = vmatpush1.msra.mxu0 %v521
        %771 = vmatprep.subr.mxu0 0.0
        %772 = vmatpush1.msra.mxu0 %v520
        %773 = vmatprep.subr.mxu0 0.0
        %774 = vmatpush1.msra.mxu0 %v519
        %775 = vmatprep.subr.mxu0 0.0
        %776 = vmatpush1.msra.mxu0 %v518
        %777 = vmatprep.subr.mxu0 0.0
        %778 = vmatpush1.msra.mxu0 %v517
        %779 = vmatprep.subr.mxu0 0.0
        %780 = vmatpush1.msra.mxu0 %v516
        %781 = vmatprep.subr.mxu0 0.0
        %782 = vmatpush1.msra.mxu0 %v515
        %783 = vmatprep.subr.mxu0 0.0
        %784 = vmatpush1.msra.mxu0 %v514
        %785 = vmatprep.subr.mxu0 0.0
        %786 = vmatpush1.msra.mxu0 %v513
        %787 = vmatprep.subr.mxu0 0.0
        %788 = vmatpush1.msra.mxu0 %v512
        %789 = vmatprep.subr.mxu0 0.0
        %790 = vmatpush1.msra.mxu0 %v511
        %791 = vmatprep.subr.mxu0 0.0
        %792 = vmatpush1.msra.mxu0 %v510
        %793 = vmatprep.subr.mxu0 0.0
        %794 = vmatpush1.msra.mxu0 %v509
        %795 = vmatprep.subr.mxu0 0.0
        %796 = vmatpush1.msra.mxu0 %v508
        %797 = vmatprep.subr.mxu0 0.0
        %798 = vmatpush2.msra.mxu0 %v539
        %799 = vmatprep.subr.mxu0 0.0
        %800 = vmatpush2.msra.mxu0 %v538
        %801 = vmatprep.subr.mxu0 0.0
        %802 = vmatpush2.msra.mxu0 %v537
        %803 = vmatprep.subr.mxu0 0.0
        %804 = vmatpush2.msra.mxu0 %v536
        %805 = vmatprep.subr.mxu0 0.0
        %806 = vmatpush2.msra.mxu0 %v535
        %807 = vmatprep.subr.mxu0 0.0
        %808 = vmatpush2.msra.mxu0 %v534
        %809 = vmatprep.subr.mxu0 0.0
        %810 = vmatpush2.msra.mxu0 %v533
        %811 = vmatprep.subr.mxu0 0.0
        %812 = vmatpush2.msra.mxu0 %v532
        %813 = vmatprep.subr.mxu0 0.0
        %814 = vmatpush2.msra.mxu0 %v531
        %815 = vmatprep.subr.mxu0 0.0
        %816 = vmatpush2.msra.mxu0 %v530
        %817 = vmatprep.subr.mxu0 0.0
        %818 = vmatpush2.msra.mxu0 %v529
        %819 = vmatprep.subr.mxu0 0.0
        %820 = vmatpush2.msra.mxu0 %v528
        %821 = vmatprep.subr.mxu0 0.0
        %822 = vmatpush2.msra.mxu0 %v527
        %823 = vmatprep.subr.mxu0 0.0
        %824 = vmatpush2.msra.mxu0 %v526
        %825 = vmatprep.subr.mxu0 0.0
        %826 = vmatpush2.msra.mxu0 %v525
        %827 = vmatprep.subr.mxu0 0.0
        %828 = vmatpush2.msra.mxu0 %v524
        %829 = vmatprep.mubr.f32.mxu0 %v351
        %830 = vmatmul.mubr.f32.gmra.mxu0 %v350
        %v831 = vpop.f32.mrf.mxu0
        %v832 = vadd.f32 %v607, %v831
        %v833 = vpop.f32.mrf.mxu0
        %834 = vmatprep.mubr.f32.mxu0 %v355
        %835 = vmatmul.mubr.f32.gmra.mxu0 %v354
        %v836 = vpop.f32.mrf.mxu0
        %v837 = vadd.f32 %v612, %v836
        %v838 = vpop.f32.mrf.mxu0
        %839 = vmatprep.mubr.f32.mxu0 %v359
        %840 = vmatmul.mubr.f32.gmra.mxu0 %v358
        %v841 = vpop.f32.mrf.mxu0
        %v842 = vadd.f32 %v617, %v841
        %v843 = vpop.f32.mrf.mxu0
        %844 = vmatprep.mubr.f32.mxu0 %v363
        %845 = vmatmul.mubr.f32.gmra.mxu0 %v362
        %v846 = vpop.f32.mrf.mxu0
        %v847 = vadd.f32 %v622, %v846
        %v848 = vpop.f32.mrf.mxu0
        %849 = vmatprep.mubr.f32.mxu0 %v367
        %850 = vmatmul.mubr.f32.gmra.mxu0 %v366
        %v851 = vpop.f32.mrf.mxu0
        %v852 = vadd.f32 %v627, %v851
        %v853 = vpop.f32.mrf.mxu0
        %854 = vmatprep.mubr.f32.mxu0 %v371
        %855 = vmatmul.mubr.f32.gmra.mxu0 %v370
        %v856 = vpop.f32.mrf.mxu0
        %v857 = vadd.f32 %v632, %v856
        %v858 = vpop.f32.mrf.mxu0
        %859 = vmatprep.mubr.f32.mxu0 %v375
        %860 = vmatmul.mubr.f32.gmra.mxu0 %v374
        %v861 = vpop.f32.mrf.mxu0
        %v862 = vadd.f32 %v637, %v861
        %v863 = vpop.f32.mrf.mxu0
        %864 = vmatprep.mubr.f32.mxu0 %v379
        %865 = vmatmul.mubr.f32.gmra.mxu0 %v378
        %v866 = vpop.f32.mrf.mxu0
        %v867 = vadd.f32 %v642, %v866
        %v868 = vpop.f32.mrf.mxu0
        %869 = vmatprep.mubr.f32.mxu0 %v383
        %870 = vmatmul.mubr.f32.gmra.mxu0 %v382
        %v871 = vpop.f32.mrf.mxu0
        %v872 = vadd.f32 %v647, %v871
        %v873 = vpop.f32.mrf.mxu0
        %874 = vmatprep.mubr.f32.mxu0 %v387
        %875 = vmatmul.mubr.f32.gmra.mxu0 %v386
        %v876 = vpop.f32.mrf.mxu0
        %v877 = vadd.f32 %v652, %v876
        %v878 = vpop.f32.mrf.mxu0
        %879 = vmatprep.mubr.f32.mxu0 %v391
        %880 = vmatmul.mubr.f32.gmra.mxu0 %v390
        %v881 = vpop.f32.mrf.mxu0
        %v882 = vadd.f32 %v657, %v881
        %v883 = vpop.f32.mrf.mxu0
        %884 = vmatprep.mubr.f32.mxu0 %v395
        %885 = vmatmul.mubr.f32.gmra.mxu0 %v394
        %v886 = vpop.f32.mrf.mxu0
        %v887 = vadd.f32 %v662, %v886
        %v888 = vpop.f32.mrf.mxu0
        %889 = vmatprep.mubr.f32.mxu0 %v399
        %890 = vmatmul.mubr.f32.gmra.mxu0 %v398
        %v891 = vpop.f32.mrf.mxu0
        %v892 = vadd.f32 %v667, %v891
        %v893 = vpop.f32.mrf.mxu0
        %894 = vmatprep.mubr.f32.mxu0 %v403
        %895 = vmatmul.mubr.f32.gmra.mxu0 %v402
        %v896 = vpop.f32.mrf.mxu0
        %v897 = vadd.f32 %v672, %v896
        %v898 = vpop.f32.mrf.mxu0
        %899 = vmatprep.mubr.f32.mxu0 %v407
        %900 = vmatmul.mubr.f32.gmra.mxu0 %v406
        %v901 = vpop.f32.mrf.mxu0
        %v902 = vadd.f32 %v677, %v901
        %v903 = vpop.f32.mrf.mxu0
        %904 = vmatprep.mubr.f32.mxu0 %v411
        %905 = vmatmul.mubr.f32.gmra.mxu0 %v410
        %v906 = vpop.f32.mrf.mxu0
        %v907 = vadd.f32 %v682, %v906
        %v908 = vpop.f32.mrf.mxu0
        %909 = vmatprep.mubr.f32.mxu0 %v415
        %910 = vmatmul.mubr.f32.gmra.mxu0 %v414
        %v911 = vpop.f32.mrf.mxu0
        %v912 = vadd.f32 %v687, %v911
        %v913 = vpop.f32.mrf.mxu0
        %914 = vmatprep.mubr.f32.mxu0 %v419
        %915 = vmatmul.mubr.f32.gmra.mxu0 %v418
        %v916 = vpop.f32.mrf.mxu0
        %v917 = vadd.f32 %v692, %v916
        %v918 = vpop.f32.mrf.mxu0
        %919 = vmatprep.mubr.f32.mxu0 %v423
        %920 = vmatmul.mubr.f32.gmra.mxu0 %v422
        %v921 = vpop.f32.mrf.mxu0
        %v922 = vadd.f32 %v697, %v921
        %v923 = vpop.f32.mrf.mxu0
        %924 = vmatprep.mubr.f32.mxu0 %v427
        %925 = vmatmul.mubr.f32.gmra.mxu0 %v426
        %v926 = vpop.f32.mrf.mxu0
        %v927 = vadd.f32 %v702, %v926
        %v928 = vpop.f32.mrf.mxu0
        %929 = vmatprep.mubr.f32.mxu0 %v431
        %930 = vmatmul.mubr.f32.gmra.mxu0 %v430
        %v931 = vpop.f32.mrf.mxu0
        %v932 = vadd.f32 %v707, %v931
        %v933 = vpop.f32.mrf.mxu0
        %934 = vmatprep.mubr.f32.mxu0 %v435
        %935 = vmatmul.mubr.f32.gmra.mxu0 %v434
        %v936 = vpop.f32.mrf.mxu0
        %v937 = vadd.f32 %v712, %v936
        %v938 = vpop.f32.mrf.mxu0
        %939 = vmatprep.mubr.f32.mxu0 %v439
        %940 = vmatmul.mubr.f32.gmra.mxu0 %v438
        %v941 = vpop.f32.mrf.mxu0
        %v942 = vadd.f32 %v717, %v941
        %v943 = vpop.f32.mrf.mxu0
        %944 = vmatprep.mubr.f32.mxu0 %v443
        %945 = vmatmul.mubr.f32.gmra.mxu0 %v442
        %v946 = vpop.f32.mrf.mxu0
        %v947 = vadd.f32 %v722, %v946
        %v948 = vpop.f32.mrf.mxu0
        %949 = vmatprep.mubr.f32.mxu0 %v447
        %950 = vmatmul.mubr.f32.gmra.mxu0 %v446
        %v951 = vpop.f32.mrf.mxu0
        %v952 = vadd.f32 %v727, %v951
        %v953 = vpop.f32.mrf.mxu0
        %954 = vmatprep.mubr.f32.mxu0 %v451
        %955 = vmatmul.mubr.f32.gmra.mxu0 %v450
        %v956 = vpop.f32.mrf.mxu0
        %v957 = vadd.f32 %v732, %v956
        %v958 = vpop.f32.mrf.mxu0
        %959 = vmatprep.mubr.f32.mxu0 %v455
        %960 = vmatmul.mubr.f32.gmra.mxu0 %v454
        %v961 = vpop.f32.mrf.mxu0
        %v962 = vadd.f32 %v737, %v961
        %v963 = vpop.f32.mrf.mxu0
        %964 = vmatprep.mubr.f32.mxu0 %v459
        %965 = vmatmul.mubr.f32.gmra.mxu0 %v458
        %v966 = vpop.f32.mrf.mxu0
        %v967 = vadd.f32 %v742, %v966
        %v968 = vpop.f32.mrf.mxu0
        %969 = vmatprep.mubr.f32.mxu0 %v463
        %970 = vmatmul.mubr.f32.gmra.mxu0 %v462
        %v971 = vpop.f32.mrf.mxu0
        %v972 = vadd.f32 %v747, %v971
        %v973 = vpop.f32.mrf.mxu0
        %974 = vmatprep.mubr.f32.mxu0 %v467
        %975 = vmatmul.mubr.f32.gmra.mxu0 %v466
        %v976 = vpop.f32.mrf.mxu0
        %v977 = vadd.f32 %v752, %v976
        %v978 = vpop.f32.mrf.mxu0
        %979 = vmatprep.mubr.f32.mxu0 %v471
        %980 = vmatmul.mubr.f32.gmra.mxu0 %v470
        %v981 = vpop.f32.mrf.mxu0
        %v982 = vadd.f32 %v757, %v981
        %v983 = vpop.f32.mrf.mxu0
        %984 = vmatprep.mubr.f32.mxu0 %v475
        %985 = vmatmul.mubr.f32.gmra.mxu0 %v474
        %v986 = vpop.f32.mrf.mxu0
        %v987 = vadd.f32 %v762, %v986
        %v988 = vpop.f32.mrf.mxu0
        %989 = vdwg.mxu0
        %v990 = vadd.f32 %v316, %v832
        %v991 = vadd.f32 %v317, %v837
        %v992 = vadd.f32 %v318, %v842
        %v993 = vadd.f32 %v319, %v847
        %v994 = vadd.f32 %v320, %v852
        %v995 = vadd.f32 %v321, %v857
        %v996 = vadd.f32 %v322, %v862
        %v997 = vadd.f32 %v323, %v867
        %v998 = vadd.f32 %v324, %v872
        %v999 = vadd.f32 %v325, %v877
        %v1000 = vadd.f32 %v326, %v882
        %v1001 = vadd.f32 %v327, %v887
        %v1002 = vadd.f32 %v328, %v892
        %v1003 = vadd.f32 %v329, %v897
        %v1004 = vadd.f32 %v330, %v902
        %v1005 = vadd.f32 %v331, %v907
        %v1006 = vadd.f32 %v332, %v912
        %v1007 = vadd.f32 %v333, %v917
        %v1008 = vadd.f32 %v334, %v922
        %v1009 = vadd.f32 %v335, %v927
        %v1010 = vadd.f32 %v336, %v932
        %v1011 = vadd.f32 %v337, %v937
        %v1012 = vadd.f32 %v338, %v942
        %v1013 = vadd.f32 %v339, %v947
        %v1014 = vadd.f32 %v340, %v952
        %v1015 = vadd.f32 %v341, %v957
        %v1016 = vadd.f32 %v342, %v962
        %v1017 = vadd.f32 %v343, %v967
        %v1018 = vadd.f32 %v344, %v972
        %v1019 = vadd.f32 %v345, %v977
        %v1020 = vadd.f32 %v346, %v982
        %v1021 = vadd.f32 %v347, %v987
        %vm1022 = vcmask 64512
        %1023 = vst.msk [vmem:[#allocation2] sm:$0xff] %vm1022, %v990
        %1024 = vst.msk [vmem:[#allocation2 + $0x8] sm:$0xff] %vm1022, %v991
        %1025 = vst.msk [vmem:[#allocation2 + $0x10] sm:$0xff] %vm1022, %v992
        %1026 = vst.msk [vmem:[#allocation2 + $0x18] sm:$0xff] %vm1022, %v993
        %1027 = vst.msk [vmem:[#allocation2 + $0x20] sm:$0xff] %vm1022, %v994
        %1028 = vst.msk [vmem:[#allocation2 + $0x28] sm:$0xff] %vm1022, %v995
        %1029 = vst.msk [vmem:[#allocation2 + $0x30] sm:$0xff] %vm1022, %v996
        %1030 = vst.msk [vmem:[#allocation2 + $0x38] sm:$0xff] %vm1022, %v997
        %1031 = vst.msk [vmem:[#allocation2 + $0x40] sm:$0xff] %vm1022, %v998
        %1032 = vst.msk [vmem:[#allocation2 + $0x48] sm:$0xff] %vm1022, %v999
        %1033 = vst.msk [vmem:[#allocation2 + $0x50] sm:$0xff] %vm1022, %v1000
        %1034 = vst.msk [vmem:[#allocation2 + $0x58] sm:$0xff] %vm1022, %v1001
        %1035 = vst.msk [vmem:[#allocation2 + $0x60] sm:$0xff] %vm1022, %v1002
        %1036 = vst.msk [vmem:[#allocation2 + $0x68] sm:$0xff] %vm1022, %v1003
        %1037 = vst.msk [vmem:[#allocation2 + $0x70] sm:$0xff] %vm1022, %v1004
        %1038 = vst.msk [vmem:[#allocation2 + $0x78] sm:$0xff] %vm1022, %v1005
        %1039 = vst.msk [vmem:[#allocation2 + $0x80] sm:$0xff] %vm1022, %v1006
        %1040 = vst.msk [vmem:[#allocation2 + $0x88] sm:$0xff] %vm1022, %v1007
        %1041 = vst.msk [vmem:[#allocation2 + $0x90] sm:$0xff] %vm1022, %v1008
        %1042 = vst.msk [vmem:[#allocation2 + $0x98] sm:$0xff] %vm1022, %v1009
        %1043 = vst.msk [vmem:[#allocation2 + $0xa0] sm:$0xff] %vm1022, %v1010
        %1044 = vst.msk [vmem:[#allocation2 + $0xa8] sm:$0xff] %vm1022, %v1011
        %1045 = vst.msk [vmem:[#allocation2 + $0xb0] sm:$0xff] %vm1022, %v1012
        %1046 = vst.msk [vmem:[#allocation2 + $0xb8] sm:$0xff] %vm1022, %v1013
        %1047 = vst.msk [vmem:[#allocation2 + $0xc0] sm:$0xff] %vm1022, %v1014
        %1048 = vst.msk [vmem:[#allocation2 + $0xc8] sm:$0xff] %vm1022, %v1015
        %1049 = vst.msk [vmem:[#allocation2 + $0xd0] sm:$0xff] %vm1022, %v1016
        %1050 = vst.msk [vmem:[#allocation2 + $0xd8] sm:$0xff] %vm1022, %v1017
        %1051 = vst.msk [vmem:[#allocation2 + $0xe0] sm:$0xff] %vm1022, %v1018
        %1052 = vst.msk [vmem:[#allocation2 + $0xe8] sm:$0xff] %vm1022, %v1019
        %1053 = vst.msk [vmem:[#allocation2 + $0xf0] sm:$0xff] %vm1022, %v1020
        %1054 = vst.msk [vmem:[#allocation2 + $0xf8] sm:$0xff] %vm1022, %v1021
        // Predicated region
        $region45: #{tpu_custom_call.1} parent=31 // pred_check
          %p1055 = pneg %p279
        $region46: #{tpu_custom_call.1} parent=31 // pred_check_branch
          %1057 = sbr.rel (%p1055) target = $region48
        $region47: #{tpu_custom_call.1} parent=31 // pred_region
          %v1058 = vld [vmem:[#allocation2] sm:$0xff]
          %v1059 = vld [vmem:[#allocation2 + $0x8] sm:$0xff]
          %v1060 = vld [vmem:[#allocation2 + $0x10] sm:$0xff]
          %v1061 = vld [vmem:[#allocation2 + $0x18] sm:$0xff]
          %v1062 = vld [vmem:[#allocation2 + $0x20] sm:$0xff]
          %v1063 = vld [vmem:[#allocation2 + $0x28] sm:$0xff]
          %v1064 = vld [vmem:[#allocation2 + $0x30] sm:$0xff]
          %v1065 = vld [vmem:[#allocation2 + $0x38] sm:$0xff]
          %v1066 = vld [vmem:[#allocation2 + $0x40] sm:$0xff]
          %v1067 = vld [vmem:[#allocation2 + $0x48] sm:$0xff]
          %v1068 = vld [vmem:[#allocation2 + $0x50] sm:$0xff]
          %v1069 = vld [vmem:[#allocation2 + $0x58] sm:$0xff]
          %v1070 = vld [vmem:[#allocation2 + $0x60] sm:$0xff]
          %v1071 = vld [vmem:[#allocation2 + $0x68] sm:$0xff]
          %v1072 = vld [vmem:[#allocation2 + $0x70] sm:$0xff]
          %v1073 = vld [vmem:[#allocation2 + $0x78] sm:$0xff]
          %v1074 = vld [vmem:[#allocation2 + $0x80] sm:$0xff]
          %v1075 = vld [vmem:[#allocation2 + $0x88] sm:$0xff]
          %v1076 = vld [vmem:[#allocation2 + $0x90] sm:$0xff]
          %v1077 = vld [vmem:[#allocation2 + $0x98] sm:$0xff]
          %v1078 = vld [vmem:[#allocation2 + $0xa0] sm:$0xff]
          %v1079 = vld [vmem:[#allocation2 + $0xa8] sm:$0xff]
          %v1080 = vld [vmem:[#allocation2 + $0xb0] sm:$0xff]
          %v1081 = vld [vmem:[#allocation2 + $0xb8] sm:$0xff]
          %v1082 = vld [vmem:[#allocation2 + $0xc0] sm:$0xff]
          %v1083 = vld [vmem:[#allocation2 + $0xc8] sm:$0xff]
          %v1084 = vld [vmem:[#allocation2 + $0xd0] sm:$0xff]
          %v1085 = vld [vmem:[#allocation2 + $0xd8] sm:$0xff]
          %v1086 = vld [vmem:[#allocation2 + $0xe0] sm:$0xff]
          %v1087 = vld [vmem:[#allocation2 + $0xe8] sm:$0xff]
          %v1088 = vld [vmem:[#allocation2 + $0xf0] sm:$0xff]
          %v1089 = vld [vmem:[#allocation2 + $0xf8] sm:$0xff]
          %v1090 = vld [vmem:[#allocation5] sm:$0x1]
          %v1092 = vlaneseq
          %v1093 = vshrl.u32 %v1092, 7
          %v1094 = vsub.s32 0, %v1093
          %v1095 = vrot.slane %v1090, %v1094
          %v1097 = vadd.f32 %v1058, %v1095
          %v1098 = vadd.f32 %v1059, %v1095
          %v1099 = vadd.f32 %v1060, %v1095
          %v1100 = vadd.f32 %v1061, %v1095
          %v1101 = vadd.f32 %v1062, %v1095
          %v1102 = vadd.f32 %v1063, %v1095
          %v1103 = vadd.f32 %v1064, %v1095
          %v1104 = vadd.f32 %v1065, %v1095
          %v1105 = vadd.f32 %v1066, %v1095
          %v1106 = vadd.f32 %v1067, %v1095
          %v1107 = vadd.f32 %v1068, %v1095
          %v1108 = vadd.f32 %v1069, %v1095
          %v1109 = vadd.f32 %v1070, %v1095
          %v1110 = vadd.f32 %v1071, %v1095
          %v1111 = vadd.f32 %v1072, %v1095
          %v1112 = vadd.f32 %v1073, %v1095
          %v1113 = vadd.f32 %v1074, %v1095
          %v1114 = vadd.f32 %v1075, %v1095
          %v1115 = vadd.f32 %v1076, %v1095
          %v1116 = vadd.f32 %v1077, %v1095
          %v1117 = vadd.f32 %v1078, %v1095
          %v1118 = vadd.f32 %v1079, %v1095
          %v1119 = vadd.f32 %v1080, %v1095
          %v1120 = vadd.f32 %v1081, %v1095
          %v1121 = vadd.f32 %v1082, %v1095
          %v1122 = vadd.f32 %v1083, %v1095
          %v1123 = vadd.f32 %v1084, %v1095
          %v1124 = vadd.f32 %v1085, %v1095
          %v1125 = vadd.f32 %v1086, %v1095
          %v1126 = vadd.f32 %v1087, %v1095
          %v1127 = vadd.f32 %v1088, %v1095
          %v1128 = vadd.f32 %v1089, %v1095
          %1129 = vst.msk [vmem:[%s277] sm:$0xff] %vm1022, %v1097
          %1130 = vst.msk [vmem:[%s277 + $0x8] sm:$0xff] %vm1022, %v1098
          %1131 = vst.msk [vmem:[%s277 + $0x10] sm:$0xff] %vm1022, %v1099
          %1132 = vst.msk [vmem:[%s277 + $0x18] sm:$0xff] %vm1022, %v1100
          %1133 = vst.msk [vmem:[%s277 + $0x20] sm:$0xff] %vm1022, %v1101
          %1134 = vst.msk [vmem:[%s277 + $0x28] sm:$0xff] %vm1022, %v1102
          %1135 = vst.msk [vmem:[%s277 + $0x30] sm:$0xff] %vm1022, %v1103
          %1136 = vst.msk [vmem:[%s277 + $0x38] sm:$0xff] %vm1022, %v1104
          %1137 = vst.msk [vmem:[%s277 + $0x40] sm:$0xff] %vm1022, %v1105
          %1138 = vst.msk [vmem:[%s277 + $0x48] sm:$0xff] %vm1022, %v1106
          %1139 = vst.msk [vmem:[%s277 + $0x50] sm:$0xff] %vm1022, %v1107
          %1140 = vst.msk [vmem:[%s277 + $0x58] sm:$0xff] %vm1022, %v1108
          %1141 = vst.msk [vmem:[%s277 + $0x60] sm:$0xff] %vm1022, %v1109
          %1142 = vst.msk [vmem:[%s277 + $0x68] sm:$0xff] %vm1022, %v1110
          %1143 = vst.msk [vmem:[%s277 + $0x70] sm:$0xff] %vm1022, %v1111
          %1144 = vst.msk [vmem:[%s277 + $0x78] sm:$0xff] %vm1022, %v1112
          %1145 = vst.msk [vmem:[%s277 + $0x80] sm:$0xff] %vm1022, %v1113
          %1146 = vst.msk [vmem:[%s277 + $0x88] sm:$0xff] %vm1022, %v1114
          %1147 = vst.msk [vmem:[%s277 + $0x90] sm:$0xff] %vm1022, %v1115
          %1148 = vst.msk [vmem:[%s277 + $0x98] sm:$0xff] %vm1022, %v1116
          %1149 = vst.msk [vmem:[%s277 + $0xa0] sm:$0xff] %vm1022, %v1117
          %1150 = vst.msk [vmem:[%s277 + $0xa8] sm:$0xff] %vm1022, %v1118
          %1151 = vst.msk [vmem:[%s277 + $0xb0] sm:$0xff] %vm1022, %v1119
          %1152 = vst.msk [vmem:[%s277 + $0xb8] sm:$0xff] %vm1022, %v1120
          %1153 = vst.msk [vmem:[%s277 + $0xc0] sm:$0xff] %vm1022, %v1121
          %1154 = vst.msk [vmem:[%s277 + $0xc8] sm:$0xff] %vm1022, %v1122
          %1155 = vst.msk [vmem:[%s277 + $0xd0] sm:$0xff] %vm1022, %v1123
          %1156 = vst.msk [vmem:[%s277 + $0xd8] sm:$0xff] %vm1022, %v1124
          %1157 = vst.msk [vmem:[%s277 + $0xe0] sm:$0xff] %vm1022, %v1125
          %1158 = vst.msk [vmem:[%s277 + $0xe8] sm:$0xff] %vm1022, %v1126
          %1159 = vst.msk [vmem:[%s277 + $0xf0] sm:$0xff] %vm1022, %v1127
          %1160 = vst.msk [vmem:[%s277 + $0xf8] sm:$0xff] %vm1022, %v1128
        $region48: #{tpu_custom_call.1} parent=31 // pred_fallthru
          _
        %s1161 = smul.u32 32, %s23
        %p1162 = scmp.lt.s32.totalorder %s1161, 2175
        %s1163 = scalar_select %p1162, %s1161, 2175
        %p1164 = scmp.lt.s32.totalorder %s24, 0
        %s1165 = scalar_select %p1164, %s24, 0
        %s1166 = sadd.s32 %s1165, %s1163
        %s1167 = smul.addr %s1166, 8
        %s1168 = scalar_lea.vmem %s3, %s1167
        // Predicated region
        $region49: #{tpu_custom_call.1} parent=31 // pred_check
          %p1169 = pneg %p139
        $region50: #{tpu_custom_call.1} parent=31 // pred_check_branch
          %1171 = sbr.rel (%p1169) target = $region52
        $region51: #{tpu_custom_call.1} parent=31 // pred_region
          %s1172 = smul.u32 32, %s23
        $region52: #{tpu_custom_call.1} parent=31 // pred_fallthru
          _
      $region32: #{tpu_custom_call.1} parent=5 // pred_fallthru
        _
      %p1173 = scmp.le.s32.totalorder 2, %s13
      // Predicated region
      $region53: #{tpu_custom_call.1} parent=5 // pred_check
        %p1174 = pneg %p1173
      $region54: #{tpu_custom_call.1} parent=5 // pred_check_branch
        %1176 = sbr.rel (%p1174) target = $region56
      $region55: #{tpu_custom_call.1} parent=5 // pred_region
        %s1177 = ssub.s32 %s13, 2
        // Predicated region
        $region57: #{tpu_custom_call.1} parent=55 // pred_check
          %p1178 = pneg %p145
        $region58: #{tpu_custom_call.1} parent=55 // pred_check_branch
          %1180 = sbr.rel (%p1178) target = $region60
        $region59: #{tpu_custom_call.1} parent=55 // pred_region
          %s1181 = smul.u32 32, %s26
          %p1182 = scmp.lt.s32.totalorder %s1181, 2175
          %s1183 = scalar_select %p1182, %s1181, 2175
          %p1184 = scmp.lt.s32.totalorder %s27, 0
          %s1185 = scalar_select %p1184, %s27, 0
          %s1186 = sadd.s32 %s1185, %s1183
          %s1187 = smul.addr %s1186, 8
          %s1188 = scalar_lea.vmem %s3, %s1187
        $region60: #{tpu_custom_call.1} parent=55 // pred_fallthru
          _
      $region56: #{tpu_custom_call.1} parent=5 // pred_fallthru
        _
    $region6: #{tpu_custom_call.1} parent=1 // loop_footer
      %s17 = sadd.s32 1, %s13
    $region7: #{tpu_custom_call.1} parent=1 // loop_footer_branch
      %12 = sbr.rel target = $region3
    $region8: #{tpu_custom_call.1} parent=1 // loop_exit
      _
    %1189 = vsyncpa [#allocation4], 1
    %s1190 = scalar_lea.sflag [#allocation4], 1
    %1191 = vsyncpa %s1190, 1
    %1192 = vsyncpa [#allocation6], 1

</llo_original>
